<compile_context>
chip_gen: v6e
topology: v6e:2x2x1
jax: 0.10.0
libtpu: 0.0.40
codegen_flags: <defaults>
</compile_context>

<pallas_src>
import jax
import jax.numpy as jnp
from jax.experimental import pallas as pl
from jax.experimental.pallas import tpu as pltpu

NUM = 256          # hidden width from the PyTorch module
MAX_TILE_B = 512   # cap on batch-lanes per grid step (VMEM is nowhere near tight)
_W3_ROWS = 8       # pad l3's single output row so its MXU matmul isn't M=1


def _round_up(x, m):
    return ((x + m - 1) // m) * m


def _default_epilogue_dtype():
    # bf16 bias+ReLU on bf16-native VPUs (v6e / v7x); f32 on v5e and older.
    try:
        kind = jax.devices()[0].device_kind.lower()
    except Exception:
        return jnp.float32
    if any(old in kind for old in ("v2", "v3", "v4", "v5")):
        return jnp.float32
    return jnp.bfloat16


def _pick_tile_b(batch):
    if batch <= 128:
        # Single full-array tile rounded to the sublane granularity: no dead
        # 128-row padding for tiny batches.
        return _round_up(max(batch, 1), 8)
    # Tiled case: lane-dense blocks need tile_b to be a multiple of 128, and we
    # want >=2 grid steps so v7x's two TensorCores both get work.
    return min(MAX_TILE_B, _round_up(-(-batch // 2), 128))


def _make_kernel(epi_dtype):
    def kernel(x_ref, w1_ref, b1_ref, w2_ref, b2_ref, w3_ref, b3_ref, o_ref):
        # x_ref: [k_pad, tile_b] f32 with the batch on the lane axis.
        # Weights are PyTorch-layout [out, in] bf16, so each layer is W @ h and
        # the batch never leaves the lane axis (fully lane-dense pipeline).
        x = x_ref[...].astype(jnp.bfloat16)

        # Layer 1 (fused state+action, zero-padded K): MXU, f32 accumulation.
        h1 = jnp.dot(w1_ref[...], x, preferred_element_type=jnp.float32)
        h1 = jnp.maximum(h1.astype(epi_dtype) + b1_ref[...], 0)     # relu(l1)

        # Layer 2: MXU, f32 accumulation; epilogue in epi_dtype.
        h2 = jnp.dot(w2_ref[...], h1.astype(jnp.bfloat16),
                     preferred_element_type=jnp.float32)
        h2 = jnp.maximum(h2.astype(epi_dtype) + b2_ref[...], 0)     # relu(l2)

        # Layer 3 (256 -> 1) on the (idle) MXU; w3 padded to 8 rows, row 0 real.
        q = jnp.dot(w3_ref[...], h2.astype(jnp.bfloat16),
                    preferred_element_type=jnp.float32)             # [8, tile_b]
        o_ref[...] = (q[0:1, :] + b3_ref[0]).astype(o_ref.dtype)    # l3 row

    return kernel


def prepare_params(params, epilogue_dtype=None):
    """One-time conversion of PyTorch-layout params into kernel-ready operands.

    params = ((w1, b1), (w2, b2), (w3, b3)) with w: [out, in], b: [out]
    (same layout as nn.Linear.weight / .bias).  Call once and reuse for every
    forward pass -- this is deliberately NOT done inside c_critic_forward.
    """
    if epilogue_dtype is None:
        epilogue_dtype = _default_epilogue_dtype()
    (w1, b1), (w2, b2), (w3, b3) = params
    in_dim = w1.shape[1]
    k_pad = _round_up(max(in_dim, 16), 16)   # bf16 sublane packing on the K axis

    w1p = jnp.zeros((NUM, k_pad), jnp.bfloat16).at[:, :in_dim].set(
        w1.astype(jnp.bfloat16))
    w3p = jnp.zeros((_W3_ROWS, NUM), jnp.bfloat16).at[0, :].set(
        w3.reshape(NUM).astype(jnp.bfloat16))

    return (w1p,
            b1.reshape(NUM, 1).astype(epilogue_dtype),
            w2.astype(jnp.bfloat16),
            b2.reshape(NUM, 1).astype(epilogue_dtype),
            w3p,
            jnp.asarray(b3, jnp.float32).reshape(1))


def c_critic_forward(state, action, prepared, max_tile_b=MAX_TILE_B):
    """Pallas forward pass of C_Critic.

    state:  [B, state_dim] float32
    action: [B, action_dim] float32
    prepared: output of prepare_params (kernel-ready weights)
    returns [B, 1] float32
    """
    w1p, b1c, w2b, b2c, w3p, b3s = prepared
    batch, state_dim = state.shape
    action_dim = action.shape[1]
    in_dim = state_dim + action_dim
    k_pad = w1p.shape[1]

    tile_b = min(_pick_tile_b(batch), max_tile_b)
    num_tiles = pl.cdiv(batch, tile_b)
    b_pad = num_tiles * tile_b

    # Fused layer-1 input: concat(state, action), zero-pad K to k_pad and the
    # batch to b_pad, then put the batch on the lane axis.  This is tiny
    # (B * k_pad * 4 bytes) compared with the weight traffic it replaces.
    x = jnp.concatenate([state, action], axis=1)
    x = jnp.pad(x, ((0, b_pad - batch), (0, k_pad - in_dim)))
    x_t = x.T                                                   # [k_pad, b_pad]

    flops = 2 * b_pad * NUM * (k_pad + NUM + 1)
    bytes_accessed = (x_t.size * 4 + b_pad * 4
                      + w1p.size * 2 + w2b.size * 2 + w3p.size * 2
                      + 2 * NUM * 4 + 4)

    out = pl.pallas_call(
        _make_kernel(b1c.dtype),
        out_shape=jax.ShapeDtypeStruct((1, b_pad), jnp.float32),
        grid=(num_tiles,),
        in_specs=[
            pl.BlockSpec((k_pad, tile_b), lambda i: (0, i)),     # x tile (batch on lanes)
            pl.BlockSpec((NUM, k_pad), lambda i: (0, 0)),        # w1 (VMEM-resident)
            pl.BlockSpec((NUM, 1), lambda i: (0, 0)),            # b1 column
            pl.BlockSpec((NUM, NUM), lambda i: (0, 0)),          # w2 (VMEM-resident)
            pl.BlockSpec((NUM, 1), lambda i: (0, 0)),            # b2 column
            pl.BlockSpec((_W3_ROWS, NUM), lambda i: (0, 0)),     # w3 (row 0 real)
            pl.BlockSpec(memory_space=pltpu.MemorySpace.SMEM),   # b3 scalar
        ],
        out_specs=pl.BlockSpec((1, tile_b), lambda i: (0, i)),   # lane-dense q row
        compiler_params=pltpu.CompilerParams(
            dimension_semantics=("parallel",)),
        cost_estimate=pl.CostEstimate(
            flops=int(flops), transcendentals=0,
            bytes_accessed=int(bytes_accessed)),
    )(x_t, w1p, b1c, w2b, b2c, w3p, b3s)

    return out[0, :batch].reshape(batch, 1)


def init_params(key, state_dim, action_dim):
    """Deterministic init mimicking PyTorch nn.Linear defaults
    (uniform bound = 1/sqrt(fan_in)); PyTorch layout: w [out, in], b [out]."""
    def linear(k, fan_in, fan_out):
        kw, kb = jax.random.split(k)
        bound = 1.0 / float(jnp.sqrt(jnp.float32(fan_in)))
        w = jax.random.uniform(kw, (fan_out, fan_in), jnp.float32, -bound, bound)
        b = jax.random.uniform(kb, (fan_out,), jnp.float32, -bound, bound)
        return w, b

    k1, k2, k3 = jax.random.split(key, 3)
    return (linear(k1, state_dim + action_dim, NUM),
            linear(k2, NUM, NUM),
            linear(k3, NUM, 1))


def reference_forward(state, action, params):
    """Pure-JAX f32 reference matching the PyTorch forward."""
    (w1, b1), (w2, b2), (w3, b3) = params
    x = jnp.concatenate([state, action], axis=1)
    h1 = jnp.maximum(x @ w1.T + b1, 0.0)
    h2 = jnp.maximum(h1 @ w2.T + b2, 0.0)
    return h2 @ w3.T + b3


if __name__ == "__main__":
    key = jax.random.PRNGKey(0)
    k_state, k_action, k_params = jax.random.split(key, 3)

    batch, state_dim, action_dim = 2, 16, 4
    state = jax.random.normal(k_state, (batch, state_dim), jnp.float32)
    action = jax.random.normal(k_action, (batch, action_dim), jnp.float32)

    params = init_params(k_params, state_dim, action_dim)
    prepared = prepare_params(params)          # one-time weight prep, reused per call

    q = c_critic_forward(state, action, prepared)
    q = jax.block_until_ready(q)

    q_ref = reference_forward(state, action, params)
    assert q.shape == (batch, 1)
    max_err = float(jnp.max(jnp.abs(q - q_ref)))
    # bf16 matmul operands (f32 accumulate) vs f32 reference -> loose tolerance.
    assert jnp.allclose(q, q_ref, atol=5e-2, rtol=5e-2), (
        f"mismatch vs reference, max abs err = {max_err}")

    print("KERNEL_OK")
</pallas_src>

<mosaic_0001>
module attributes {stable_mosaic.version = 11 : i64} {
  func.func @kernel(%arg0: i32, %arg1: memref<32x8xf32, #tpu.memory_space<vmem>>, %arg2: memref<256x32xbf16, #tpu.memory_space<vmem>>, %arg3: memref<256x1xbf16, #tpu.memory_space<vmem>>, %arg4: memref<256x256xbf16, #tpu.memory_space<vmem>>, %arg5: memref<256x1xbf16, #tpu.memory_space<vmem>>, %arg6: memref<8x256xbf16, #tpu.memory_space<vmem>>, %arg7: memref<1xf32, #tpu.memory_space<smem>>, %arg8: memref<1x8xf32, #tpu.memory_space<vmem>>) attributes {dimension_semantics = [#tpu.dimension_semantics<parallel>], iteration_bounds = array<i64: 1>, scalar_prefetch = 0 : i64, scratch_operands = 0 : i64, tpu.core_type = #tpu.core_type<tc>, window_params = [{transform_indices = @transform_0, window_bounds = array<i64: 32, 8>}, {pipeline_mode = #tpu.pipeline_mode<synchronous>, transform_indices = @transform_1, window_bounds = array<i64: 256, 32>}, {pipeline_mode = #tpu.pipeline_mode<synchronous>, transform_indices = @transform_2, window_bounds = array<i64: 256, 1>}, {pipeline_mode = #tpu.pipeline_mode<synchronous>, transform_indices = @transform_3, window_bounds = array<i64: 256, 256>}, {pipeline_mode = #tpu.pipeline_mode<synchronous>, transform_indices = @transform_4, window_bounds = array<i64: 256, 1>}, {pipeline_mode = #tpu.pipeline_mode<synchronous>, transform_indices = @transform_5, window_bounds = array<i64: 8, 256>}, {transform_indices = @transform_6, window_bounds = array<i64: 1>}, {transform_indices = @transform_7, window_bounds = array<i64: 1, 8>}]} {
    %c0 = arith.constant 0 : index
    %c0_0 = arith.constant 0 : index
    %0 = vector.load %arg1[%c0, %c0_0] : memref<32x8xf32, #tpu.memory_space<vmem>>, vector<32x8xf32>
    %1 = arith.truncf %0 : vector<32x8xf32> to vector<32x8xbf16>
    %c0_1 = arith.constant 0 : index
    %c0_2 = arith.constant 0 : index
    %2 = vector.load %arg2[%c0_1, %c0_2] : memref<256x32xbf16, #tpu.memory_space<vmem>>, vector<256x32xbf16>
    %cst = arith.constant dense<0.000000e+00> : vector<256x8xf32>
    %3 = tpu.matmul %2, %1, %cst {dimension_numbers = #tpu.dot_dimension_numbers<[1], [0], [0], [1], [0, 0, 1, 1], [], []>} : vector<256x32xbf16>, vector<32x8xbf16>, vector<256x8xf32> -> vector<256x8xf32>
    %4 = arith.truncf %3 : vector<256x8xf32> to vector<256x8xbf16>
    %c0_3 = arith.constant 0 : index
    %c0_4 = arith.constant 0 : index
    %5 = vector.load %arg3[%c0_3, %c0_4] : memref<256x1xbf16, #tpu.memory_space<vmem>>, vector<256x1xbf16>
    %6 = vector.broadcast %5 : vector<256x1xbf16> to vector<256x8xbf16>
    %7 = arith.addf %4, %6 : vector<256x8xbf16>
    %cst_5 = arith.constant 0.000000e+00 : bf16
    %8 = vector.broadcast %cst_5 : bf16 to vector<256x8xbf16>
    %9 = arith.maximumf %7, %8 : vector<256x8xbf16>
    %c0_6 = arith.constant 0 : index
    %c0_7 = arith.constant 0 : index
    %10 = vector.load %arg4[%c0_6, %c0_7] : memref<256x256xbf16, #tpu.memory_space<vmem>>, vector<256x256xbf16>
    %cst_8 = arith.constant dense<0.000000e+00> : vector<256x8xf32>
    %11 = tpu.matmul %10, %9, %cst_8 {dimension_numbers = #tpu.dot_dimension_numbers<[1], [0], [0], [1], [0, 0, 1, 1], [], []>} : vector<256x256xbf16>, vector<256x8xbf16>, vector<256x8xf32> -> vector<256x8xf32>
    %12 = arith.truncf %11 : vector<256x8xf32> to vector<256x8xbf16>
    %c0_9 = arith.constant 0 : index
    %c0_10 = arith.constant 0 : index
    %13 = vector.load %arg5[%c0_9, %c0_10] : memref<256x1xbf16, #tpu.memory_space<vmem>>, vector<256x1xbf16>
    %14 = vector.broadcast %13 : vector<256x1xbf16> to vector<256x8xbf16>
    %15 = arith.addf %12, %14 : vector<256x8xbf16>
    %cst_11 = arith.constant 0.000000e+00 : bf16
    %16 = vector.broadcast %cst_11 : bf16 to vector<256x8xbf16>
    %17 = arith.maximumf %15, %16 : vector<256x8xbf16>
    %c0_12 = arith.constant 0 : index
    %c0_13 = arith.constant 0 : index
    %18 = vector.load %arg6[%c0_12, %c0_13] : memref<8x256xbf16, #tpu.memory_space<vmem>>, vector<8x256xbf16>
    %cst_14 = arith.constant dense<0.000000e+00> : vector<8x8xf32>
    %19 = tpu.matmul %18, %17, %cst_14 {dimension_numbers = #tpu.dot_dimension_numbers<[1], [0], [0], [1], [0, 0, 1, 1], [], []>} : vector<8x256xbf16>, vector<256x8xbf16>, vector<8x8xf32> -> vector<8x8xf32>
    %20 = vector.extract_strided_slice %19 {offsets = [0, 0], sizes = [1, 8], strides = [1, 1]} : vector<8x8xf32> to vector<1x8xf32>
    %c0_15 = arith.constant 0 : index
    %21 = memref.load %arg7[%c0_15] : memref<1xf32, #tpu.memory_space<smem>>
    %22 = vector.broadcast %21 : f32 to vector<1x8xf32>
    %23 = arith.addf %20, %22 : vector<1x8xf32>
    %c0_16 = arith.constant 0 : index
    %c0_17 = arith.constant 0 : index
    %24 = vector.load %arg8[%c0_16, %c0_17] : memref<1x8xf32, #tpu.memory_space<vmem>>, vector<1x8xf32>
    tpu.vector_store %arg8[%c0_16, %c0_17], %23 {strides = array<i32>} : memref<1x8xf32, #tpu.memory_space<vmem>>, vector<1x8xf32>,
    return
  }
  func.func @transform_0(%arg0: i32) -> (i32, i32) {
    %c0_i32 = arith.constant 0 : i32
    %c0_i32_0 = arith.constant 0 : i32
    return %c0_i32, %arg0 : i32, i32
  }
  func.func @transform_1(%arg0: i32) -> (i32, i32) {
    %c0_i32 = arith.constant 0 : i32
    %c0_i32_0 = arith.constant 0 : i32
    %c0_i32_1 = arith.constant 0 : i32
    return %c0_i32, %c0_i32_0 : i32, i32
  }
  func.func @transform_2(%arg0: i32) -> (i32, i32) {
    %c0_i32 = arith.constant 0 : i32
    %c0_i32_0 = arith.constant 0 : i32
    %c0_i32_1 = arith.constant 0 : i32
    return %c0_i32, %c0_i32_0 : i32, i32
  }
  func.func @transform_3(%arg0: i32) -> (i32, i32) {
    %c0_i32 = arith.constant 0 : i32
    %c0_i32_0 = arith.constant 0 : i32
    %c0_i32_1 = arith.constant 0 : i32
    return %c0_i32, %c0_i32_0 : i32, i32
  }
  func.func @transform_4(%arg0: i32) -> (i32, i32) {
    %c0_i32 = arith.constant 0 : i32
    %c0_i32_0 = arith.constant 0 : i32
    %c0_i32_1 = arith.constant 0 : i32
    return %c0_i32, %c0_i32_0 : i32, i32
  }
  func.func @transform_5(%arg0: i32) -> (i32, i32) {
    %c0_i32 = arith.constant 0 : i32
    %c0_i32_0 = arith.constant 0 : i32
    %c0_i32_1 = arith.constant 0 : i32
    return %c0_i32, %c0_i32_0 : i32, i32
  }
  func.func @transform_6(%arg0: i32) -> i32 {
    %c0_i32 = arith.constant 0 : i32
    %c0_i32_0 = arith.constant 0 : i32
    return %c0_i32 : i32
  }
  func.func @transform_7(%arg0: i32) -> (i32, i32) {
    %c0_i32 = arith.constant 0 : i32
    %c0_i32_0 = arith.constant 0 : i32
    return %c0_i32, %arg0 : i32, i32
  }
}

</mosaic_0001>

<llo_original>
// kernel: tpu_custom_call.1
$region0: #{tpu_custom_call.1}
  #allocation0 [shape = 'u32[]', space=smem, size = 0x4, offset = 0x4, fixed_abs, tag = 'smem constant byte address 0x4 - core index']
  #allocation1 [shape = 'u32[144,128]{1,0:T(1,128)}', space=vmem, size = 0x12000, scoped, tag = 'internal scratch']
  #allocation2 [shape = 'f32[1]{0:T(128)S(6)}', space=smem, size = 0x200, scoped, tag = 'scoped memory for tpu_custom_call.1']
  %s0 = inlined_call_operand.vmem [shape: f32[32,8], index: 0, kind: input, shape index: {}]
  %s1 = inlined_call_operand.vmem [shape: bf16[256,32], index: 1, kind: input, shape index: {}]
  %s2 = inlined_call_operand.vmem [shape: bf16[256,1], index: 2, kind: input, shape index: {}]
  %s3 = inlined_call_operand.vmem [shape: bf16[256,256], index: 3, kind: input, shape index: {}]
  %s4 = inlined_call_operand.vmem [shape: bf16[256,1], index: 4, kind: input, shape index: {}]
  %s5 = inlined_call_operand.vmem [shape: bf16[8,256], index: 5, kind: input, shape index: {}]
  %s6 = inlined_call_operand.<no memory space> [shape: f32[1], index: 6, kind: input, shape index: {}]
  %s7 = inlined_call_operand.hbm [shape: f32[1,8], index: 7, kind: output, shape index: {}]
  %s8 = sld [smem:[#allocation0]]
  $region38: #{tpu_custom_call.1} parent=0
    _
  %s10 = ssub.s32 1, %s8
  %s11 = scalar_select 0, %s10, %s8
  %12 = sst [smem:[#allocation2]] %s6
  $region1: #{tpu_custom_call.1} parent=0
    #allocation3 [shape = 'u8[512]{0}', space=vmem, size = 0x400, scoped, tag = 'output window, operand 0, single buffered']
    #allocation4 [shape = 's32[1]{0}', space=sflag, size = 0x4, scoped, tag = 'scoped memory for tpu_custom_call.1']
    %13 = vsyncpa [#allocation4], 0
    // Predicated region
    $region2: #{tpu_custom_call.1} parent=1 // pred_check
      _
    $region3: #{tpu_custom_call.1} parent=1 // pred_check_branch
      %15 = sbr.rel (0) target = $region5
    $region4: #{tpu_custom_call.1} parent=1 // pred_region
      _
    $region5: #{tpu_custom_call.1} parent=1 // pred_fallthru
      _
    // Predicated region
    $region6: #{tpu_custom_call.1} parent=1 // pred_check
      _
    $region7: #{tpu_custom_call.1} parent=1 // pred_check_branch
      %17 = sbr.rel (0) target = $region9
    $region8: #{tpu_custom_call.1} parent=1 // pred_region
      _
    $region9: #{tpu_custom_call.1} parent=1 // pred_fallthru
      _
    // Predicated region
    $region10: #{tpu_custom_call.1} parent=1 // pred_check
      _
    $region11: #{tpu_custom_call.1} parent=1 // pred_check_branch
      %19 = sbr.rel (0) target = $region13
    $region12: #{tpu_custom_call.1} parent=1 // pred_region
      _
    $region13: #{tpu_custom_call.1} parent=1 // pred_fallthru
      _
    // Predicated region
    $region14: #{tpu_custom_call.1} parent=1 // pred_check
      _
    $region15: #{tpu_custom_call.1} parent=1 // pred_check_branch
      %21 = sbr.rel (0) target = $region17
    $region16: #{tpu_custom_call.1} parent=1 // pred_region
      _
    $region17: #{tpu_custom_call.1} parent=1 // pred_fallthru
      _
    // Predicated region
    $region18: #{tpu_custom_call.1} parent=1 // pred_check
      _
    $region19: #{tpu_custom_call.1} parent=1 // pred_check_branch
      %23 = sbr.rel (0) target = $region21
    $region20: #{tpu_custom_call.1} parent=1 // pred_region
      _
    $region21: #{tpu_custom_call.1} parent=1 // pred_fallthru
      _
    // Predicated region
    $region22: #{tpu_custom_call.1} parent=1 // pred_check
      _
    $region23: #{tpu_custom_call.1} parent=1 // pred_check_branch
      %25 = sbr.rel (0) target = $region25
    $region24: #{tpu_custom_call.1} parent=1 // pred_region
      _
    $region25: #{tpu_custom_call.1} parent=1 // pred_fallthru
      _
    // Predicated region
    $region26: #{tpu_custom_call.1} parent=1 // pred_check
      _
    $region27: #{tpu_custom_call.1} parent=1 // pred_check_branch
      %27 = sbr.rel (0) target = $region29
    $region28: #{tpu_custom_call.1} parent=1 // pred_region
      _
    $region29: #{tpu_custom_call.1} parent=1 // pred_fallthru
      _
    %v29 = vld [vmem:[%s0] sm:$0xff]
    %v30 = vld [vmem:[%s0 + $0x8] sm:$0xff]
    %v31 = vld [vmem:[%s0 + $0x10] sm:$0xff]
    %v32 = vld [vmem:[%s0 + $0x18] sm:$0xff]
    %v33 = vpack.c.bf16 %v30, %v29
    %v34 = vpack.c.bf16 %v32, %v31
    %v35 = vld [vmem:[%s1] sm:$0xf]
    %v36 = vld [vmem:[%s1 + $0x4] sm:$0xf]
    %v37 = vld [vmem:[%s1 + $0x8] sm:$0xf]
    %v38 = vld [vmem:[%s1 + $0xc] sm:$0xf]
    %v39 = vld [vmem:[%s1 + $0x10] sm:$0xf]
    %v40 = vld [vmem:[%s1 + $0x14] sm:$0xf]
    %v41 = vld [vmem:[%s1 + $0x18] sm:$0xf]
    %v42 = vld [vmem:[%s1 + $0x1c] sm:$0xf]
    %v43 = vld [vmem:[%s1 + $0x20] sm:$0xf]
    %v44 = vld [vmem:[%s1 + $0x24] sm:$0xf]
    %v45 = vld [vmem:[%s1 + $0x28] sm:$0xf]
    %v46 = vld [vmem:[%s1 + $0x2c] sm:$0xf]
    %v47 = vld [vmem:[%s1 + $0x30] sm:$0xf]
    %v48 = vld [vmem:[%s1 + $0x34] sm:$0xf]
    %v49 = vld [vmem:[%s1 + $0x38] sm:$0xf]
    %v50 = vld [vmem:[%s1 + $0x3c] sm:$0xf]
    %v51 = vld [vmem:[%s1 + $0x40] sm:$0xf]
    %v52 = vld [vmem:[%s1 + $0x44] sm:$0xf]
    %v53 = vld [vmem:[%s1 + $0x48] sm:$0xf]
    %v54 = vld [vmem:[%s1 + $0x4c] sm:$0xf]
    %v55 = vld [vmem:[%s1 + $0x50] sm:$0xf]
    %v56 = vld [vmem:[%s1 + $0x54] sm:$0xf]
    %v57 = vld [vmem:[%s1 + $0x58] sm:$0xf]
    %v58 = vld [vmem:[%s1 + $0x5c] sm:$0xf]
    %v59 = vld [vmem:[%s1 + $0x60] sm:$0xf]
    %v60 = vld [vmem:[%s1 + $0x64] sm:$0xf]
    %v61 = vld [vmem:[%s1 + $0x68] sm:$0xf]
    %v62 = vld [vmem:[%s1 + $0x6c] sm:$0xf]
    %v63 = vld [vmem:[%s1 + $0x70] sm:$0xf]
    %v64 = vld [vmem:[%s1 + $0x74] sm:$0xf]
    %v65 = vld [vmem:[%s1 + $0x78] sm:$0xf]
    %v66 = vld [vmem:[%s1 + $0x7c] sm:$0xf]
    %v99 = vunpack.c.l.b16 %v35
    %v100 = vunpack.c.l.b16 %v36
    %v101 = vunpack.c.l.b16 %v37
    %v102 = vunpack.c.l.b16 %v38
    %v103 = vunpack.c.l.b16 %v39
    %v104 = vunpack.c.l.b16 %v40
    %v105 = vunpack.c.l.b16 %v41
    %v106 = vunpack.c.l.b16 %v42
    %v107 = vunpack.c.l.b16 %v43
    %v108 = vunpack.c.l.b16 %v44
    %v109 = vunpack.c.l.b16 %v45
    %v110 = vunpack.c.l.b16 %v46
    %v111 = vunpack.c.l.b16 %v47
    %v112 = vunpack.c.l.b16 %v48
    %v113 = vunpack.c.l.b16 %v49
    %v114 = vunpack.c.l.b16 %v50
    %v115 = vunpack.c.l.b16 %v51
    %v116 = vunpack.c.l.b16 %v52
    %v117 = vunpack.c.l.b16 %v53
    %v118 = vunpack.c.l.b16 %v54
    %v119 = vunpack.c.l.b16 %v55
    %v120 = vunpack.c.l.b16 %v56
    %v121 = vunpack.c.l.b16 %v57
    %v122 = vunpack.c.l.b16 %v58
    %v123 = vunpack.c.l.b16 %v59
    %v124 = vunpack.c.l.b16 %v60
    %v125 = vunpack.c.l.b16 %v61
    %v126 = vunpack.c.l.b16 %v62
    %v127 = vunpack.c.l.b16 %v63
    %v128 = vunpack.c.l.b16 %v64
    %v129 = vunpack.c.l.b16 %v65
    %v130 = vunpack.c.l.b16 %v66
    %v131 = vpack.c.b16 %v100, %v99
    %v132 = vpack.c.b16 %v102, %v101
    %v133 = vpack.c.b16 %v104, %v103
    %v134 = vpack.c.b16 %v106, %v105
    %v135 = vpack.c.b16 %v108, %v107
    %v136 = vpack.c.b16 %v110, %v109
    %v137 = vpack.c.b16 %v112, %v111
    %v138 = vpack.c.b16 %v114, %v113
    %v139 = vpack.c.b16 %v116, %v115
    %v140 = vpack.c.b16 %v118, %v117
    %v141 = vpack.c.b16 %v120, %v119
    %v142 = vpack.c.b16 %v122, %v121
    %v143 = vpack.c.b16 %v124, %v123
    %v144 = vpack.c.b16 %v126, %v125
    %v145 = vpack.c.b16 %v128, %v127
    %v146 = vpack.c.b16 %v130, %v129
    %vm147 = vcmask 261120
    %v149 = vsel %vm147, %v131, 0
    %v152 = vsel %vm147, %v132, 0
    %v155 = vsel %vm147, %v133, 0
    %v158 = vsel %vm147, %v134, 0
    %v161 = vsel %vm147, %v135, 0
    %v164 = vsel %vm147, %v136, 0
    %v167 = vsel %vm147, %v137, 0
    %v170 = vsel %vm147, %v138, 0
    %v173 = vsel %vm147, %v139, 0
    %v176 = vsel %vm147, %v140, 0
    %v179 = vsel %vm147, %v141, 0
    %v182 = vsel %vm147, %v142, 0
    %v185 = vsel %vm147, %v143, 0
    %v188 = vsel %vm147, %v144, 0
    %v191 = vsel %vm147, %v145, 0
    %v194 = vsel %vm147, %v146, 0
    %196 = vmatprep.subr.bf16.mxu0 0
    %197 = vmatpush1.bf16.msra.mxu0 0
    %198 = vmatprep.subr.bf16.mxu0 0
    %199 = vmatpush1.bf16.msra.mxu0 0
    %200 = vmatprep.subr.bf16.mxu0 0
    %201 = vmatpush1.bf16.msra.mxu0 0
    %202 = vmatprep.subr.bf16.mxu0 0
    %203 = vmatpush1.bf16.msra.mxu0 0
    %204 = vmatprep.subr.bf16.mxu0 0
    %205 = vmatpush1.bf16.msra.mxu0 0
    %206 = vmatprep.subr.bf16.mxu0 0
    %207 = vmatpush1.bf16.msra.mxu0 0
    %208 = vmatprep.subr.bf16.mxu0 0
    %209 = vmatpush1.bf16.msra.mxu0 %v34
    %210 = vmatprep.subr.bf16.mxu0 0
    %211 = vmatpush1.bf16.msra.mxu0 %v33
    %212 = vmatprep.subr.bf16.mxu0 0
    %213 = vmatpush2.bf16.msra.mxu0 0
    %214 = vmatprep.subr.bf16.mxu0 0
    %215 = vmatpush2.bf16.msra.mxu0 0
    %216 = vmatprep.subr.bf16.mxu0 0
    %217 = vmatpush2.bf16.msra.mxu0 0
    %218 = vmatprep.subr.bf16.mxu0 0
    %219 = vmatpush2.bf16.msra.mxu0 0
    %220 = vmatprep.subr.bf16.mxu0 0
    %221 = vmatpush2.bf16.msra.mxu0 0
    %222 = vmatprep.subr.bf16.mxu0 0
    %223 = vmatpush2.bf16.msra.mxu0 0
    %224 = vmatprep.subr.bf16.mxu0 0
    %225 = vmatpush2.bf16.msra.mxu0 0
    %226 = vmatprep.subr.bf16.mxu0 0
    %227 = vmatpush2.bf16.msra.mxu0 0
    %228 = vmatprep.mubr.bf16.mxu0 0
    %229 = vmatmul.mubr.bf16.gmra.mxu0 %v149
    %v230 = vpop.f32.mrf.mxu0
    %v231 = vadd.f32 0.0, %v230
    %v232 = vpop.f32.mrf.mxu0
    %v233 = vpop.f32.mrf.mxu0
    %v234 = vadd.f32 0.0, %v233
    %v235 = vpop.f32.mrf.mxu0
    %236 = vmatprep.mubr.bf16.mxu0 0
    %237 = vmatmul.mubr.bf16.gmra.mxu0 %v152
    %v238 = vpop.f32.mrf.mxu0
    %v239 = vadd.f32 0.0, %v238
    %v240 = vpop.f32.mrf.mxu0
    %v241 = vpop.f32.mrf.mxu0
    %v242 = vadd.f32 0.0, %v241
    %v243 = vpop.f32.mrf.mxu0
    %244 = vmatprep.mubr.bf16.mxu0 0
    %245 = vmatmul.mubr.bf16.gmra.mxu0 %v155
    %v246 = vpop.f32.mrf.mxu0
    %v247 = vadd.f32 0.0, %v246
    %v248 = vpop.f32.mrf.mxu0
    %v249 = vpop.f32.mrf.mxu0
    %v250 = vadd.f32 0.0, %v249
    %v251 = vpop.f32.mrf.mxu0
    %252 = vmatprep.mubr.bf16.mxu0 0
    %253 = vmatmul.mubr.bf16.gmra.mxu0 %v158
    %v254 = vpop.f32.mrf.mxu0
    %v255 = vadd.f32 0.0, %v254
    %v256 = vpop.f32.mrf.mxu0
    %v257 = vpop.f32.mrf.mxu0
    %v258 = vadd.f32 0.0, %v257
    %v259 = vpop.f32.mrf.mxu0
    %260 = vmatprep.mubr.bf16.mxu0 0
    %261 = vmatmul.mubr.bf16.gmra.mxu0 %v161
    %v262 = vpop.f32.mrf.mxu0
    %v263 = vadd.f32 0.0, %v262
    %v264 = vpop.f32.mrf.mxu0
    %v265 = vpop.f32.mrf.mxu0
    %v266 = vadd.f32 0.0, %v265
    %v267 = vpop.f32.mrf.mxu0
    %268 = vmatprep.mubr.bf16.mxu0 0
    %269 = vmatmul.mubr.bf16.gmra.mxu0 %v164
    %v270 = vpop.f32.mrf.mxu0
    %v271 = vadd.f32 0.0, %v270
    %v272 = vpop.f32.mrf.mxu0
    %v273 = vpop.f32.mrf.mxu0
    %v274 = vadd.f32 0.0, %v273
    %v275 = vpop.f32.mrf.mxu0
    %276 = vmatprep.mubr.bf16.mxu0 0
    %277 = vmatmul.mubr.bf16.gmra.mxu0 %v167
    %v278 = vpop.f32.mrf.mxu0
    %v279 = vadd.f32 0.0, %v278
    %v280 = vpop.f32.mrf.mxu0
    %v281 = vpop.f32.mrf.mxu0
    %v282 = vadd.f32 0.0, %v281
    %v283 = vpop.f32.mrf.mxu0
    %284 = vmatprep.mubr.bf16.mxu0 0
    %285 = vmatmul.mubr.bf16.gmra.mxu0 %v170
    %v286 = vpop.f32.mrf.mxu0
    %v287 = vadd.f32 0.0, %v286
    %v288 = vpop.f32.mrf.mxu0
    %v289 = vpop.f32.mrf.mxu0
    %v290 = vadd.f32 0.0, %v289
    %v291 = vpop.f32.mrf.mxu0
    %292 = vmatprep.mubr.bf16.mxu0 0
    %293 = vmatmul.mubr.bf16.gmra.mxu0 %v173
    %v294 = vpop.f32.mrf.mxu0
    %v295 = vadd.f32 0.0, %v294
    %v296 = vpop.f32.mrf.mxu0
    %v297 = vpop.f32.mrf.mxu0
    %v298 = vadd.f32 0.0, %v297
    %v299 = vpop.f32.mrf.mxu0
    %300 = vmatprep.mubr.bf16.mxu0 0
    %301 = vmatmul.mubr.bf16.gmra.mxu0 %v176
    %v302 = vpop.f32.mrf.mxu0
    %v303 = vadd.f32 0.0, %v302
    %v304 = vpop.f32.mrf.mxu0
    %v305 = vpop.f32.mrf.mxu0
    %v306 = vadd.f32 0.0, %v305
    %v307 = vpop.f32.mrf.mxu0
    %308 = vmatprep.mubr.bf16.mxu0 0
    %309 = vmatmul.mubr.bf16.gmra.mxu0 %v179
    %v310 = vpop.f32.mrf.mxu0
    %v311 = vadd.f32 0.0, %v310
    %v312 = vpop.f32.mrf.mxu0
    %v313 = vpop.f32.mrf.mxu0
    %v314 = vadd.f32 0.0, %v313
    %v315 = vpop.f32.mrf.mxu0
    %316 = vmatprep.mubr.bf16.mxu0 0
    %317 = vmatmul.mubr.bf16.gmra.mxu0 %v182
    %v318 = vpop.f32.mrf.mxu0
    %v319 = vadd.f32 0.0, %v318
    %v320 = vpop.f32.mrf.mxu0
    %v321 = vpop.f32.mrf.mxu0
    %v322 = vadd.f32 0.0, %v321
    %v323 = vpop.f32.mrf.mxu0
    %324 = vmatprep.mubr.bf16.mxu0 0
    %325 = vmatmul.mubr.bf16.gmra.mxu0 %v185
    %v326 = vpop.f32.mrf.mxu0
    %v327 = vadd.f32 0.0, %v326
    %v328 = vpop.f32.mrf.mxu0
    %v329 = vpop.f32.mrf.mxu0
    %v330 = vadd.f32 0.0, %v329
    %v331 = vpop.f32.mrf.mxu0
    %332 = vmatprep.mubr.bf16.mxu0 0
    %333 = vmatmul.mubr.bf16.gmra.mxu0 %v188
    %v334 = vpop.f32.mrf.mxu0
    %v335 = vadd.f32 0.0, %v334
    %v336 = vpop.f32.mrf.mxu0
    %v337 = vpop.f32.mrf.mxu0
    %v338 = vadd.f32 0.0, %v337
    %v339 = vpop.f32.mrf.mxu0
    %340 = vmatprep.mubr.bf16.mxu0 0
    %341 = vmatmul.mubr.bf16.gmra.mxu0 %v191
    %v342 = vpop.f32.mrf.mxu0
    %v343 = vadd.f32 0.0, %v342
    %v344 = vpop.f32.mrf.mxu0
    %v345 = vpop.f32.mrf.mxu0
    %v346 = vadd.f32 0.0, %v345
    %v347 = vpop.f32.mrf.mxu0
    %348 = vmatprep.mubr.bf16.mxu0 0
    %349 = vmatmul.mubr.bf16.gmra.mxu0 %v194
    %v350 = vpop.f32.mrf.mxu0
    %v351 = vadd.f32 0.0, %v350
    %v352 = vpop.f32.mrf.mxu0
    %v353 = vpop.f32.mrf.mxu0
    %v354 = vadd.f32 0.0, %v353
    %v355 = vpop.f32.mrf.mxu0
    %356 = vdwg.mxu0
    %v357 = vpack.c.bf16 %v234, %v231
    %v358 = vpack.c.bf16 %v242, %v239
    %v359 = vpack.c.bf16 %v250, %v247
    %v360 = vpack.c.bf16 %v258, %v255
    %v361 = vpack.c.bf16 %v266, %v263
    %v362 = vpack.c.bf16 %v274, %v271
    %v363 = vpack.c.bf16 %v282, %v279
    %v364 = vpack.c.bf16 %v290, %v287
    %v365 = vpack.c.bf16 %v298, %v295
    %v366 = vpack.c.bf16 %v306, %v303
    %v367 = vpack.c.bf16 %v314, %v311
    %v368 = vpack.c.bf16 %v322, %v319
    %v369 = vpack.c.bf16 %v330, %v327
    %v370 = vpack.c.bf16 %v338, %v335
    %v371 = vpack.c.bf16 %v346, %v343
    %v372 = vpack.c.bf16 %v354, %v351
    %v373 = vld [vmem:[%s2] sm:$0xf]
    %v374 = vld [vmem:[%s2 + $0x4] sm:$0xf]
    %v375 = vld [vmem:[%s2 + $0x8] sm:$0xf]
    %v376 = vld [vmem:[%s2 + $0xc] sm:$0xf]
    %v377 = vld [vmem:[%s2 + $0x10] sm:$0xf]
    %v378 = vld [vmem:[%s2 + $0x14] sm:$0xf]
    %v379 = vld [vmem:[%s2 + $0x18] sm:$0xf]
    %v380 = vld [vmem:[%s2 + $0x1c] sm:$0xf]
    %v381 = vld [vmem:[%s2 + $0x20] sm:$0xf]
    %v382 = vld [vmem:[%s2 + $0x24] sm:$0xf]
    %v383 = vld [vmem:[%s2 + $0x28] sm:$0xf]
    %v384 = vld [vmem:[%s2 + $0x2c] sm:$0xf]
    %v385 = vld [vmem:[%s2 + $0x30] sm:$0xf]
    %v386 = vld [vmem:[%s2 + $0x34] sm:$0xf]
    %v387 = vld [vmem:[%s2 + $0x38] sm:$0xf]
    %v388 = vld [vmem:[%s2 + $0x3c] sm:$0xf]
    %v389 = vld [vmem:[%s2 + $0x40] sm:$0xf]
    %v390 = vld [vmem:[%s2 + $0x44] sm:$0xf]
    %v391 = vld [vmem:[%s2 + $0x48] sm:$0xf]
    %v392 = vld [vmem:[%s2 + $0x4c] sm:$0xf]
    %v393 = vld [vmem:[%s2 + $0x50] sm:$0xf]
    %v394 = vld [vmem:[%s2 + $0x54] sm:$0xf]
    %v395 = vld [vmem:[%s2 + $0x58] sm:$0xf]
    %v396 = vld [vmem:[%s2 + $0x5c] sm:$0xf]
    %v397 = vld [vmem:[%s2 + $0x60] sm:$0xf]
    %v398 = vld [vmem:[%s2 + $0x64] sm:$0xf]
    %v399 = vld [vmem:[%s2 + $0x68] sm:$0xf]
    %v400 = vld [vmem:[%s2 + $0x6c] sm:$0xf]
    %v401 = vld [vmem:[%s2 + $0x70] sm:$0xf]
    %v402 = vld [vmem:[%s2 + $0x74] sm:$0xf]
    %v403 = vld [vmem:[%s2 + $0x78] sm:$0xf]
    %v404 = vld [vmem:[%s2 + $0x7c] sm:$0xf]
    %406 = vset.pattern.permute.xlu0 0
    %407 = vperm.xlu0 %406, %v373
    %v408 = vpop.permute.xlu0 %407
    %v411 = vunpack.c.l.s4 839922192
    %v412 = vunpack.c.0.s8 %v411
    %v413 = vlaneseq
    %v414 = vshrl.u32 %v413, 7
    %v415 = vsub.s32 %v412, %v414
    %v416 = vrot.slane %v408, %v415
    %418 = vset.pattern.permute.xlu0 0
    %419 = vperm.xlu0 %418, %v374
    %v420 = vpop.permute.xlu0 %419
    %v423 = vunpack.c.l.s4 839922192
    %v424 = vunpack.c.0.s8 %v423
    %v425 = vlaneseq
    %v426 = vshrl.u32 %v425, 7
    %v427 = vsub.s32 %v424, %v426
    %v428 = vrot.slane %v420, %v427
    %430 = vset.pattern.permute.xlu0 0
    %431 = vperm.xlu0 %430, %v375
    %v432 = vpop.permute.xlu0 %431
    %v435 = vunpack.c.l.s4 839922192
    %v436 = vunpack.c.0.s8 %v435
    %v437 = vlaneseq
    %v438 = vshrl.u32 %v437, 7
    %v439 = vsub.s32 %v436, %v438
    %v440 = vrot.slane %v432, %v439
    %442 = vset.pattern.permute.xlu0 0
    %443 = vperm.xlu0 %442, %v376
    %v444 = vpop.permute.xlu0 %443
    %v447 = vunpack.c.l.s4 839922192
    %v448 = vunpack.c.0.s8 %v447
    %v449 = vlaneseq
    %v450 = vshrl.u32 %v449, 7
    %v451 = vsub.s32 %v448, %v450
    %v452 = vrot.slane %v444, %v451
    %454 = vset.pattern.permute.xlu0 0
    %455 = vperm.xlu0 %454, %v377
    %v456 = vpop.permute.xlu0 %455
    %v459 = vunpack.c.l.s4 839922192
    %v460 = vunpack.c.0.s8 %v459
    %v461 = vlaneseq
    %v462 = vshrl.u32 %v461, 7
    %v463 = vsub.s32 %v460, %v462
    %v464 = vrot.slane %v456, %v463
    %466 = vset.pattern.permute.xlu0 0
    %467 = vperm.xlu0 %466, %v378
    %v468 = vpop.permute.xlu0 %467
    %v471 = vunpack.c.l.s4 839922192
    %v472 = vunpack.c.0.s8 %v471
    %v473 = vlaneseq
    %v474 = vshrl.u32 %v473, 7
    %v475 = vsub.s32 %v472, %v474
    %v476 = vrot.slane %v468, %v475
    %478 = vset.pattern.permute.xlu0 0
    %479 = vperm.xlu0 %478, %v379
    %v480 = vpop.permute.xlu0 %479
    %v483 = vunpack.c.l.s4 839922192
    %v484 = vunpack.c.0.s8 %v483
    %v485 = vlaneseq
    %v486 = vshrl.u32 %v485, 7
    %v487 = vsub.s32 %v484, %v486
    %v488 = vrot.slane %v480, %v487
    %490 = vset.pattern.permute.xlu0 0
    %491 = vperm.xlu0 %490, %v380
    %v492 = vpop.permute.xlu0 %491
    %v495 = vunpack.c.l.s4 839922192
    %v496 = vunpack.c.0.s8 %v495
    %v497 = vlaneseq
    %v498 = vshrl.u32 %v497, 7
    %v499 = vsub.s32 %v496, %v498
    %v500 = vrot.slane %v492, %v499
    %502 = vset.pattern.permute.xlu0 0
    %503 = vperm.xlu0 %502, %v381
    %v504 = vpop.permute.xlu0 %503
    %v507 = vunpack.c.l.s4 839922192
    %v508 = vunpack.c.0.s8 %v507
    %v509 = vlaneseq
    %v510 = vshrl.u32 %v509, 7
    %v511 = vsub.s32 %v508, %v510
    %v512 = vrot.slane %v504, %v511
    %514 = vset.pattern.permute.xlu0 0
    %515 = vperm.xlu0 %514, %v382
    %v516 = vpop.permute.xlu0 %515
    %v519 = vunpack.c.l.s4 839922192
    %v520 = vunpack.c.0.s8 %v519
    %v521 = vlaneseq
    %v522 = vshrl.u32 %v521, 7
    %v523 = vsub.s32 %v520, %v522
    %v524 = vrot.slane %v516, %v523
    %526 = vset.pattern.permute.xlu0 0
    %527 = vperm.xlu0 %526, %v383
    %v528 = vpop.permute.xlu0 %527
    %v531 = vunpack.c.l.s4 839922192
    %v532 = vunpack.c.0.s8 %v531
    %v533 = vlaneseq
    %v534 = vshrl.u32 %v533, 7
    %v535 = vsub.s32 %v532, %v534
    %v536 = vrot.slane %v528, %v535
    %538 = vset.pattern.permute.xlu0 0
    %539 = vperm.xlu0 %538, %v384
    %v540 = vpop.permute.xlu0 %539
    %v543 = vunpack.c.l.s4 839922192
    %v544 = vunpack.c.0.s8 %v543
    %v545 = vlaneseq
    %v546 = vshrl.u32 %v545, 7
    %v547 = vsub.s32 %v544, %v546
    %v548 = vrot.slane %v540, %v547
    %550 = vset.pattern.permute.xlu0 0
    %551 = vperm.xlu0 %550, %v385
    %v552 = vpop.permute.xlu0 %551
    %v555 = vunpack.c.l.s4 839922192
    %v556 = vunpack.c.0.s8 %v555
    %v557 = vlaneseq
    %v558 = vshrl.u32 %v557, 7
    %v559 = vsub.s32 %v556, %v558
    %v560 = vrot.slane %v552, %v559
    %562 = vset.pattern.permute.xlu0 0
    %563 = vperm.xlu0 %562, %v386
    %v564 = vpop.permute.xlu0 %563
    %v567 = vunpack.c.l.s4 839922192
    %v568 = vunpack.c.0.s8 %v567
    %v569 = vlaneseq
    %v570 = vshrl.u32 %v569, 7
    %v571 = vsub.s32 %v568, %v570
    %v572 = vrot.slane %v564, %v571
    %574 = vset.pattern.permute.xlu0 0
    %575 = vperm.xlu0 %574, %v387
    %v576 = vpop.permute.xlu0 %575
    %v579 = vunpack.c.l.s4 839922192
    %v580 = vunpack.c.0.s8 %v579
    %v581 = vlaneseq
    %v582 = vshrl.u32 %v581, 7
    %v583 = vsub.s32 %v580, %v582
    %v584 = vrot.slane %v576, %v583
    %586 = vset.pattern.permute.xlu0 0
    %587 = vperm.xlu0 %586, %v388
    %v588 = vpop.permute.xlu0 %587
    %v591 = vunpack.c.l.s4 839922192
    %v592 = vunpack.c.0.s8 %v591
    %v593 = vlaneseq
    %v594 = vshrl.u32 %v593, 7
    %v595 = vsub.s32 %v592, %v594
    %v596 = vrot.slane %v588, %v595
    %598 = vset.pattern.permute.xlu0 0
    %599 = vperm.xlu0 %598, %v389
    %v600 = vpop.permute.xlu0 %599
    %v603 = vunpack.c.l.s4 839922192
    %v604 = vunpack.c.0.s8 %v603
    %v605 = vlaneseq
    %v606 = vshrl.u32 %v605, 7
    %v607 = vsub.s32 %v604, %v606
    %v608 = vrot.slane %v600, %v607
    %610 = vset.pattern.permute.xlu0 0
    %611 = vperm.xlu0 %610, %v390
    %v612 = vpop.permute.xlu0 %611
    %v615 = vunpack.c.l.s4 839922192
    %v616 = vunpack.c.0.s8 %v615
    %v617 = vlaneseq
    %v618 = vshrl.u32 %v617, 7
    %v619 = vsub.s32 %v616, %v618
    %v620 = vrot.slane %v612, %v619
    %622 = vset.pattern.permute.xlu0 0
    %623 = vperm.xlu0 %622, %v391
    %v624 = vpop.permute.xlu0 %623
    %v627 = vunpack.c.l.s4 839922192
    %v628 = vunpack.c.0.s8 %v627
    %v629 = vlaneseq
    %v630 = vshrl.u32 %v629, 7
    %v631 = vsub.s32 %v628, %v630
    %v632 = vrot.slane %v624, %v631
    %634 = vset.pattern.permute.xlu0 0
    %635 = vperm.xlu0 %634, %v392
    %v636 = vpop.permute.xlu0 %635
    %v639 = vunpack.c.l.s4 839922192
    %v640 = vunpack.c.0.s8 %v639
    %v641 = vlaneseq
    %v642 = vshrl.u32 %v641, 7
    %v643 = vsub.s32 %v640, %v642
    %v644 = vrot.slane %v636, %v643
    %646 = vset.pattern.permute.xlu0 0
    %647 = vperm.xlu0 %646, %v393
    %v648 = vpop.permute.xlu0 %647
    %v651 = vunpack.c.l.s4 839922192
    %v652 = vunpack.c.0.s8 %v651
    %v653 = vlaneseq
    %v654 = vshrl.u32 %v653, 7
    %v655 = vsub.s32 %v652, %v654
    %v656 = vrot.slane %v648, %v655
    %658 = vset.pattern.permute.xlu0 0
    %659 = vperm.xlu0 %658, %v394
    %v660 = vpop.permute.xlu0 %659
    %v663 = vunpack.c.l.s4 839922192
    %v664 = vunpack.c.0.s8 %v663
    %v665 = vlaneseq
    %v666 = vshrl.u32 %v665, 7
    %v667 = vsub.s32 %v664, %v666
    %v668 = vrot.slane %v660, %v667
    %670 = vset.pattern.permute.xlu0 0
    %671 = vperm.xlu0 %670, %v395
    %v672 = vpop.permute.xlu0 %671
    %v675 = vunpack.c.l.s4 839922192
    %v676 = vunpack.c.0.s8 %v675
    %v677 = vlaneseq
    %v678 = vshrl.u32 %v677, 7
    %v679 = vsub.s32 %v676, %v678
    %v680 = vrot.slane %v672, %v679
    %682 = vset.pattern.permute.xlu0 0
    %683 = vperm.xlu0 %682, %v396
    %v684 = vpop.permute.xlu0 %683
    %v687 = vunpack.c.l.s4 839922192
    %v688 = vunpack.c.0.s8 %v687
    %v689 = vlaneseq
    %v690 = vshrl.u32 %v689, 7
    %v691 = vsub.s32 %v688, %v690
    %v692 = vrot.slane %v684, %v691
    %694 = vset.pattern.permute.xlu0 0
    %695 = vperm.xlu0 %694, %v397
    %v696 = vpop.permute.xlu0 %695
    %v699 = vunpack.c.l.s4 839922192
    %v700 = vunpack.c.0.s8 %v699
    %v701 = vlaneseq
    %v702 = vshrl.u32 %v701, 7
    %v703 = vsub.s32 %v700, %v702
    %v704 = vrot.slane %v696, %v703
    %706 = vset.pattern.permute.xlu0 0
    %707 = vperm.xlu0 %706, %v398
    %v708 = vpop.permute.xlu0 %707
    %v711 = vunpack.c.l.s4 839922192
    %v712 = vunpack.c.0.s8 %v711
    %v713 = vlaneseq
    %v714 = vshrl.u32 %v713, 7
    %v715 = vsub.s32 %v712, %v714
    %v716 = vrot.slane %v708, %v715
    %718 = vset.pattern.permute.xlu0 0
    %719 = vperm.xlu0 %718, %v399
    %v720 = vpop.permute.xlu0 %719
    %v723 = vunpack.c.l.s4 839922192
    %v724 = vunpack.c.0.s8 %v723
    %v725 = vlaneseq
    %v726 = vshrl.u32 %v725, 7
    %v727 = vsub.s32 %v724, %v726
    %v728 = vrot.slane %v720, %v727
    %730 = vset.pattern.permute.xlu0 0
    %731 = vperm.xlu0 %730, %v400
    %v732 = vpop.permute.xlu0 %731
    %v735 = vunpack.c.l.s4 839922192
    %v736 = vunpack.c.0.s8 %v735
    %v737 = vlaneseq
    %v738 = vshrl.u32 %v737, 7
    %v739 = vsub.s32 %v736, %v738
    %v740 = vrot.slane %v732, %v739
    %742 = vset.pattern.permute.xlu0 0
    %743 = vperm.xlu0 %742, %v401
    %v744 = vpop.permute.xlu0 %743
    %v747 = vunpack.c.l.s4 839922192
    %v748 = vunpack.c.0.s8 %v747
    %v749 = vlaneseq
    %v750 = vshrl.u32 %v749, 7
    %v751 = vsub.s32 %v748, %v750
    %v752 = vrot.slane %v744, %v751
    %754 = vset.pattern.permute.xlu0 0
    %755 = vperm.xlu0 %754, %v402
    %v756 = vpop.permute.xlu0 %755
    %v759 = vunpack.c.l.s4 839922192
    %v760 = vunpack.c.0.s8 %v759
    %v761 = vlaneseq
    %v762 = vshrl.u32 %v761, 7
    %v763 = vsub.s32 %v760, %v762
    %v764 = vrot.slane %v756, %v763
    %766 = vset.pattern.permute.xlu0 0
    %767 = vperm.xlu0 %766, %v403
    %v768 = vpop.permute.xlu0 %767
    %v771 = vunpack.c.l.s4 839922192
    %v772 = vunpack.c.0.s8 %v771
    %v773 = vlaneseq
    %v774 = vshrl.u32 %v773, 7
    %v775 = vsub.s32 %v772, %v774
    %v776 = vrot.slane %v768, %v775
    %778 = vset.pattern.permute.xlu0 0
    %779 = vperm.xlu0 %778, %v404
    %v780 = vpop.permute.xlu0 %779
    %v783 = vunpack.c.l.s4 839922192
    %v784 = vunpack.c.0.s8 %v783
    %v785 = vlaneseq
    %v786 = vshrl.u32 %v785, 7
    %v787 = vsub.s32 %v784, %v786
    %v788 = vrot.slane %v780, %v787
    %v821 = vunpack.c.l.b16 %v416
    %v822 = vunpack.c.l.b16 %v428
    %v823 = vunpack.c.l.b16 %v440
    %v824 = vunpack.c.l.b16 %v452
    %v825 = vunpack.c.l.b16 %v464
    %v826 = vunpack.c.l.b16 %v476
    %v827 = vunpack.c.l.b16 %v488
    %v828 = vunpack.c.l.b16 %v500
    %v829 = vunpack.c.l.b16 %v512
    %v830 = vunpack.c.l.b16 %v524
    %v831 = vunpack.c.l.b16 %v536
    %v832 = vunpack.c.l.b16 %v548
    %v833 = vunpack.c.l.b16 %v560
    %v834 = vunpack.c.l.b16 %v572
    %v835 = vunpack.c.l.b16 %v584
    %v836 = vunpack.c.l.b16 %v596
    %v837 = vunpack.c.l.b16 %v608
    %v838 = vunpack.c.l.b16 %v620
    %v839 = vunpack.c.l.b16 %v632
    %v840 = vunpack.c.l.b16 %v644
    %v841 = vunpack.c.l.b16 %v656
    %v842 = vunpack.c.l.b16 %v668
    %v843 = vunpack.c.l.b16 %v680
    %v844 = vunpack.c.l.b16 %v692
    %v845 = vunpack.c.l.b16 %v704
    %v846 = vunpack.c.l.b16 %v716
    %v847 = vunpack.c.l.b16 %v728
    %v848 = vunpack.c.l.b16 %v740
    %v849 = vunpack.c.l.b16 %v752
    %v850 = vunpack.c.l.b16 %v764
    %v851 = vunpack.c.l.b16 %v776
    %v852 = vunpack.c.l.b16 %v788
    %v853 = vpack.c.b16 %v822, %v821
    %v854 = vpack.c.b16 %v824, %v823
    %v855 = vpack.c.b16 %v826, %v825
    %v856 = vpack.c.b16 %v828, %v827
    %v857 = vpack.c.b16 %v830, %v829
    %v858 = vpack.c.b16 %v832, %v831
    %v859 = vpack.c.b16 %v834, %v833
    %v860 = vpack.c.b16 %v836, %v835
    %v861 = vpack.c.b16 %v838, %v837
    %v862 = vpack.c.b16 %v840, %v839
    %v863 = vpack.c.b16 %v842, %v841
    %v864 = vpack.c.b16 %v844, %v843
    %v865 = vpack.c.b16 %v846, %v845
    %v866 = vpack.c.b16 %v848, %v847
    %v867 = vpack.c.b16 %v850, %v849
    %v868 = vpack.c.b16 %v852, %v851
    %v885 = vadd.bf16 %v357, %v853
    %v886 = vadd.bf16 %v358, %v854
    %v887 = vadd.bf16 %v359, %v855
    %v888 = vadd.bf16 %v360, %v856
    %v889 = vadd.bf16 %v361, %v857
    %v890 = vadd.bf16 %v362, %v858
    %v891 = vadd.bf16 %v363, %v859
    %v892 = vadd.bf16 %v364, %v860
    %v893 = vadd.bf16 %v365, %v861
    %v894 = vadd.bf16 %v366, %v862
    %v895 = vadd.bf16 %v367, %v863
    %v896 = vadd.bf16 %v368, %v864
    %v897 = vadd.bf16 %v369, %v865
    %v898 = vadd.bf16 %v370, %v866
    %v899 = vadd.bf16 %v371, %v867
    %v900 = vadd.bf16 %v372, %v868
    %v901 = vmax.bf16 %v885, 0
    %v902 = vmax.bf16 %v886, 0
    %v903 = vmax.bf16 %v887, 0
    %v904 = vmax.bf16 %v888, 0
    %v905 = vmax.bf16 %v889, 0
    %v906 = vmax.bf16 %v890, 0
    %v907 = vmax.bf16 %v891, 0
    %v908 = vmax.bf16 %v892, 0
    %v909 = vmax.bf16 %v893, 0
    %v910 = vmax.bf16 %v894, 0
    %v911 = vmax.bf16 %v895, 0
    %v912 = vmax.bf16 %v896, 0
    %v913 = vmax.bf16 %v897, 0
    %v914 = vmax.bf16 %v898, 0
    %v915 = vmax.bf16 %v899, 0
    %v916 = vmax.bf16 %v900, 0
    %v917 = vld [vmem:[%s3] sm:$0xff]
    %v918 = vld [vmem:[%s3 + $0x8] sm:$0xff]
    %v919 = vld [vmem:[%s3 + $0x10] sm:$0xff]
    %v920 = vld [vmem:[%s3 + $0x18] sm:$0xff]
    %v921 = vld [vmem:[%s3 + $0x20] sm:$0xff]
    %v922 = vld [vmem:[%s3 + $0x28] sm:$0xff]
    %v923 = vld [vmem:[%s3 + $0x30] sm:$0xff]
    %v924 = vld [vmem:[%s3 + $0x38] sm:$0xff]
    %v925 = vld [vmem:[%s3 + $0x40] sm:$0xff]
    %v926 = vld [vmem:[%s3 + $0x48] sm:$0xff]
    %v927 = vld [vmem:[%s3 + $0x50] sm:$0xff]
    %v928 = vld [vmem:[%s3 + $0x58] sm:$0xff]
    %v929 = vld [vmem:[%s3 + $0x60] sm:$0xff]
    %v930 = vld [vmem:[%s3 + $0x68] sm:$0xff]
    %v931 = vld [vmem:[%s3 + $0x70] sm:$0xff]
    %v932 = vld [vmem:[%s3 + $0x78] sm:$0xff]
    %v933 = vld [vmem:[%s3 + $0x80] sm:$0xff]
    %v934 = vld [vmem:[%s3 + $0x88] sm:$0xff]
    %v935 = vld [vmem:[%s3 + $0x90] sm:$0xff]
    %v936 = vld [vmem:[%s3 + $0x98] sm:$0xff]
    %v937 = vld [vmem:[%s3 + $0xa0] sm:$0xff]
    %v938 = vld [vmem:[%s3 + $0xa8] sm:$0xff]
    %v939 = vld [vmem:[%s3 + $0xb0] sm:$0xff]
    %v940 = vld [vmem:[%s3 + $0xb8] sm:$0xff]
    %v941 = vld [vmem:[%s3 + $0xc0] sm:$0xff]
    %v942 = vld [vmem:[%s3 + $0xc8] sm:$0xff]
    %v943 = vld [vmem:[%s3 + $0xd0] sm:$0xff]
    %v944 = vld [vmem:[%s3 + $0xd8] sm:$0xff]
    %v945 = vld [vmem:[%s3 + $0xe0] sm:$0xff]
    %v946 = vld [vmem:[%s3 + $0xe8] sm:$0xff]
    %v947 = vld [vmem:[%s3 + $0xf0] sm:$0xff]
    %v948 = vld [vmem:[%s3 + $0xf8] sm:$0xff]
    %v981 = vunpack.c.l.b16 %v917
    %v982 = vunpack.c.h.b16 %v917
    %v983 = vunpack.c.l.b16 %v918
    %v984 = vunpack.c.h.b16 %v918
    %v985 = vunpack.c.l.b16 %v919
    %v986 = vunpack.c.h.b16 %v919
    %v987 = vunpack.c.l.b16 %v920
    %v988 = vunpack.c.h.b16 %v920
    %v989 = vunpack.c.l.b16 %v921
    %v990 = vunpack.c.h.b16 %v921
    %v991 = vunpack.c.l.b16 %v922
    %v992 = vunpack.c.h.b16 %v922
    %v993 = vunpack.c.l.b16 %v923
    %v994 = vunpack.c.h.b16 %v923
    %v995 = vunpack.c.l.b16 %v924
    %v996 = vunpack.c.h.b16 %v924
    %v997 = vunpack.c.l.b16 %v925
    %v998 = vunpack.c.h.b16 %v925
    %v999 = vunpack.c.l.b16 %v926
    %v1000 = vunpack.c.h.b16 %v926
    %v1001 = vunpack.c.l.b16 %v927
    %v1002 = vunpack.c.h.b16 %v927
    %v1003 = vunpack.c.l.b16 %v928
    %v1004 = vunpack.c.h.b16 %v928
    %v1005 = vunpack.c.l.b16 %v929
    %v1006 = vunpack.c.h.b16 %v929
    %v1007 = vunpack.c.l.b16 %v930
    %v1008 = vunpack.c.h.b16 %v930
    %v1009 = vunpack.c.l.b16 %v931
    %v1010 = vunpack.c.h.b16 %v931
    %v1011 = vunpack.c.l.b16 %v932
    %v1012 = vunpack.c.h.b16 %v932
    %v1013 = vunpack.c.l.b16 %v933
    %v1014 = vunpack.c.h.b16 %v933
    %v1015 = vunpack.c.l.b16 %v934
    %v1016 = vunpack.c.h.b16 %v934
    %v1017 = vunpack.c.l.b16 %v935
    %v1018 = vunpack.c.h.b16 %v935
    %v1019 = vunpack.c.l.b16 %v936
    %v1020 = vunpack.c.h.b16 %v936
    %v1021 = vunpack.c.l.b16 %v937
    %v1022 = vunpack.c.h.b16 %v937
    %v1023 = vunpack.c.l.b16 %v938
    %v1024 = vunpack.c.h.b16 %v938
    %v1025 = vunpack.c.l.b16 %v939
    %v1026 = vunpack.c.h.b16 %v939
    %v1027 = vunpack.c.l.b16 %v940
    %v1028 = vunpack.c.h.b16 %v940
    %v1029 = vunpack.c.l.b16 %v941
    %v1030 = vunpack.c.h.b16 %v941
    %v1031 = vunpack.c.l.b16 %v942
    %v1032 = vunpack.c.h.b16 %v942
    %v1033 = vunpack.c.l.b16 %v943
    %v1034 = vunpack.c.h.b16 %v943
    %v1035 = vunpack.c.l.b16 %v944
    %v1036 = vunpack.c.h.b16 %v944
    %v1037 = vunpack.c.l.b16 %v945
    %v1038 = vunpack.c.h.b16 %v945
    %v1039 = vunpack.c.l.b16 %v946
    %v1040 = vunpack.c.h.b16 %v946
    %v1041 = vunpack.c.l.b16 %v947
    %v1042 = vunpack.c.h.b16 %v947
    %v1043 = vunpack.c.l.b16 %v948
    %v1044 = vunpack.c.h.b16 %v948
    %v1045 = vpack.c.b16 %v983, %v981
    %v1046 = vpack.c.b16 %v984, %v982
    %v1047 = vpack.c.b16 %v987, %v985
    %v1048 = vpack.c.b16 %v988, %v986
    %v1049 = vpack.c.b16 %v991, %v989
    %v1050 = vpack.c.b16 %v992, %v990
    %v1051 = vpack.c.b16 %v995, %v993
    %v1052 = vpack.c.b16 %v996, %v994
    %v1053 = vpack.c.b16 %v999, %v997
    %v1054 = vpack.c.b16 %v1000, %v998
    %v1055 = vpack.c.b16 %v1003, %v1001
    %v1056 = vpack.c.b16 %v1004, %v1002
    %v1057 = vpack.c.b16 %v1007, %v1005
    %v1058 = vpack.c.b16 %v1008, %v1006
    %v1059 = vpack.c.b16 %v1011, %v1009
    %v1060 = vpack.c.b16 %v1012, %v1010
    %v1061 = vpack.c.b16 %v1015, %v1013
    %v1062 = vpack.c.b16 %v1016, %v1014
    %v1063 = vpack.c.b16 %v1019, %v1017
    %v1064 = vpack.c.b16 %v1020, %v1018
    %v1065 = vpack.c.b16 %v1023, %v1021
    %v1066 = vpack.c.b16 %v1024, %v1022
    %v1067 = vpack.c.b16 %v1027, %v1025
    %v1068 = vpack.c.b16 %v1028, %v1026
    %v1069 = vpack.c.b16 %v1031, %v1029
    %v1070 = vpack.c.b16 %v1032, %v1030
    %v1071 = vpack.c.b16 %v1035, %v1033
    %v1072 = vpack.c.b16 %v1036, %v1034
    %v1073 = vpack.c.b16 %v1039, %v1037
    %v1074 = vpack.c.b16 %v1040, %v1038
    %v1075 = vpack.c.b16 %v1043, %v1041
    %v1076 = vpack.c.b16 %v1044, %v1042
    %1109 = vmatprep.subr.bf16.mxu0 0
    %1110 = vmatpush1.bf16.msra.mxu0 %v908
    %1111 = vmatprep.subr.bf16.mxu0 0
    %1112 = vmatpush1.bf16.msra.mxu0 %v907
    %1113 = vmatprep.subr.bf16.mxu0 0
    %1114 = vmatpush1.bf16.msra.mxu0 %v906
    %1115 = vmatprep.subr.bf16.mxu0 0
    %1116 = vmatpush1.bf16.msra.mxu0 %v905
    %1117 = vmatprep.subr.bf16.mxu0 0
    %1118 = vmatpush1.bf16.msra.mxu0 %v904
    %1119 = vmatprep.subr.bf16.mxu0 0
    %1120 = vmatpush1.bf16.msra.mxu0 %v903
    %1121 = vmatprep.subr.bf16.mxu0 0
    %1122 = vmatpush1.bf16.msra.mxu0 %v902
    %1123 = vmatprep.subr.bf16.mxu0 0
    %1124 = vmatpush1.bf16.msra.mxu0 %v901
    %1125 = vmatprep.subr.bf16.mxu0 0
    %1126 = vmatpush2.bf16.msra.mxu0 %v916
    %1127 = vmatprep.subr.bf16.mxu0 0
    %1128 = vmatpush2.bf16.msra.mxu0 %v915
    %1129 = vmatprep.subr.bf16.mxu0 0
    %1130 = vmatpush2.bf16.msra.mxu0 %v914
    %1131 = vmatprep.subr.bf16.mxu0 0
    %1132 = vmatpush2.bf16.msra.mxu0 %v913
    %1133 = vmatprep.subr.bf16.mxu0 0
    %1134 = vmatpush2.bf16.msra.mxu0 %v912
    %1135 = vmatprep.subr.bf16.mxu0 0
    %1136 = vmatpush2.bf16.msra.mxu0 %v911
    %1137 = vmatprep.subr.bf16.mxu0 0
    %1138 = vmatpush2.bf16.msra.mxu0 %v910
    %1139 = vmatprep.subr.bf16.mxu0 0
    %1140 = vmatpush2.bf16.msra.mxu0 %v909
    %1141 = vmatprep.mubr.bf16.mxu0 %v1046
    %1142 = vmatmul.mubr.bf16.gmra.mxu0 %v1045
    %v1143 = vpop.f32.mrf.mxu0
    %v1144 = vadd.f32 0.0, %v1143
    %v1145 = vpop.f32.mrf.mxu0
    %v1146 = vpop.f32.mrf.mxu0
    %v1147 = vadd.f32 0.0, %v1146
    %v1148 = vpop.f32.mrf.mxu0
    %1149 = vmatprep.mubr.bf16.mxu0 %v1048
    %1150 = vmatmul.mubr.bf16.gmra.mxu0 %v1047
    %v1151 = vpop.f32.mrf.mxu0
    %v1152 = vadd.f32 0.0, %v1151
    %v1153 = vpop.f32.mrf.mxu0
    %v1154 = vpop.f32.mrf.mxu0
    %v1155 = vadd.f32 0.0, %v1154
    %v1156 = vpop.f32.mrf.mxu0
    %1157 = vmatprep.mubr.bf16.mxu0 %v1050
    %1158 = vmatmul.mubr.bf16.gmra.mxu0 %v1049
    %v1159 = vpop.f32.mrf.mxu0
    %v1160 = vadd.f32 0.0, %v1159
    %v1161 = vpop.f32.mrf.mxu0
    %v1162 = vpop.f32.mrf.mxu0
    %v1163 = vadd.f32 0.0, %v1162
    %v1164 = vpop.f32.mrf.mxu0
    %1165 = vmatprep.mubr.bf16.mxu0 %v1052
    %1166 = vmatmul.mubr.bf16.gmra.mxu0 %v1051
    %v1167 = vpop.f32.mrf.mxu0
    %v1168 = vadd.f32 0.0, %v1167
    %v1169 = vpop.f32.mrf.mxu0
    %v1170 = vpop.f32.mrf.mxu0
    %v1171 = vadd.f32 0.0, %v1170
    %v1172 = vpop.f32.mrf.mxu0
    %1173 = vmatprep.mubr.bf16.mxu0 %v1054
    %1174 = vmatmul.mubr.bf16.gmra.mxu0 %v1053
    %v1175 = vpop.f32.mrf.mxu0
    %v1176 = vadd.f32 0.0, %v1175
    %v1177 = vpop.f32.mrf.mxu0
    %v1178 = vpop.f32.mrf.mxu0
    %v1179 = vadd.f32 0.0, %v1178
    %v1180 = vpop.f32.mrf.mxu0
    %1181 = vmatprep.mubr.bf16.mxu0 %v1056
    %1182 = vmatmul.mubr.bf16.gmra.mxu0 %v1055
    %v1183 = vpop.f32.mrf.mxu0
    %v1184 = vadd.f32 0.0, %v1183
    %v1185 = vpop.f32.mrf.mxu0
    %v1186 = vpop.f32.mrf.mxu0
    %v1187 = vadd.f32 0.0, %v1186
    %v1188 = vpop.f32.mrf.mxu0
    %1189 = vmatprep.mubr.bf16.mxu0 %v1058
    %1190 = vmatmul.mubr.bf16.gmra.mxu0 %v1057
    %v1191 = vpop.f32.mrf.mxu0
    %v1192 = vadd.f32 0.0, %v1191
    %v1193 = vpop.f32.mrf.mxu0
    %v1194 = vpop.f32.mrf.mxu0
    %v1195 = vadd.f32 0.0, %v1194
    %v1196 = vpop.f32.mrf.mxu0
    %1197 = vmatprep.mubr.bf16.mxu0 %v1060
    %1198 = vmatmul.mubr.bf16.gmra.mxu0 %v1059
    %v1199 = vpop.f32.mrf.mxu0
    %v1200 = vadd.f32 0.0, %v1199
    %v1201 = vpop.f32.mrf.mxu0
    %v1202 = vpop.f32.mrf.mxu0
    %v1203 = vadd.f32 0.0, %v1202
    %v1204 = vpop.f32.mrf.mxu0
    %1205 = vmatprep.mubr.bf16.mxu0 %v1062
    %1206 = vmatmul.mubr.bf16.gmra.mxu0 %v1061
    %v1207 = vpop.f32.mrf.mxu0
    %v1208 = vadd.f32 0.0, %v1207
    %v1209 = vpop.f32.mrf.mxu0
    %v1210 = vpop.f32.mrf.mxu0
    %v1211 = vadd.f32 0.0, %v1210
    %v1212 = vpop.f32.mrf.mxu0
    %1213 = vmatprep.mubr.bf16.mxu0 %v1064
    %1214 = vmatmul.mubr.bf16.gmra.mxu0 %v1063
    %v1215 = vpop.f32.mrf.mxu0
    %v1216 = vadd.f32 0.0, %v1215
    %v1217 = vpop.f32.mrf.mxu0
    %v1218 = vpop.f32.mrf.mxu0
    %v1219 = vadd.f32 0.0, %v1218
    %v1220 = vpop.f32.mrf.mxu0
    %1221 = vmatprep.mubr.bf16.mxu0 %v1066
    %1222 = vmatmul.mubr.bf16.gmra.mxu0 %v1065
    %v1223 = vpop.f32.mrf.mxu0
    %v1224 = vadd.f32 0.0, %v1223
    %v1225 = vpop.f32.mrf.mxu0
    %v1226 = vpop.f32.mrf.mxu0
    %v1227 = vadd.f32 0.0, %v1226
    %v1228 = vpop.f32.mrf.mxu0
    %1229 = vmatprep.mubr.bf16.mxu0 %v1068
    %1230 = vmatmul.mubr.bf16.gmra.mxu0 %v1067
    %v1231 = vpop.f32.mrf.mxu0
    %v1232 = vadd.f32 0.0, %v1231
    %v1233 = vpop.f32.mrf.mxu0
    %v1234 = vpop.f32.mrf.mxu0
    %v1235 = vadd.f32 0.0, %v1234
    %v1236 = vpop.f32.mrf.mxu0
    %1237 = vmatprep.mubr.bf16.mxu0 %v1070
    %1238 = vmatmul.mubr.bf16.gmra.mxu0 %v1069
    %v1239 = vpop.f32.mrf.mxu0
    %v1240 = vadd.f32 0.0, %v1239
    %v1241 = vpop.f32.mrf.mxu0
    %v1242 = vpop.f32.mrf.mxu0
    %v1243 = vadd.f32 0.0, %v1242
    %v1244 = vpop.f32.mrf.mxu0
    %1245 = vmatprep.mubr.bf16.mxu0 %v1072
    %1246 = vmatmul.mubr.bf16.gmra.mxu0 %v1071
    %v1247 = vpop.f32.mrf.mxu0
    %v1248 = vadd.f32 0.0, %v1247
    %v1249 = vpop.f32.mrf.mxu0
    %v1250 = vpop.f32.mrf.mxu0
    %v1251 = vadd.f32 0.0, %v1250
    %v1252 = vpop.f32.mrf.mxu0
    %1253 = vmatprep.mubr.bf16.mxu0 %v1074
    %1254 = vmatmul.mubr.bf16.gmra.mxu0 %v1073
    %v1255 = vpop.f32.mrf.mxu0
    %v1256 = vadd.f32 0.0, %v1255
    %v1257 = vpop.f32.mrf.mxu0
    %v1258 = vpop.f32.mrf.mxu0
    %v1259 = vadd.f32 0.0, %v1258
    %v1260 = vpop.f32.mrf.mxu0
    %1261 = vmatprep.mubr.bf16.mxu0 %v1076
    %1262 = vmatmul.mubr.bf16.gmra.mxu0 %v1075
    %v1263 = vpop.f32.mrf.mxu0
    %v1264 = vadd.f32 0.0, %v1263
    %v1265 = vpop.f32.mrf.mxu0
    %v1266 = vpop.f32.mrf.mxu0
    %v1267 = vadd.f32 0.0, %v1266
    %v1268 = vpop.f32.mrf.mxu0
    %1269 = vdwg.mxu0
    %v1270 = vpack.c.bf16 %v1147, %v1144
    %v1271 = vpack.c.bf16 %v1155, %v1152
    %v1272 = vpack.c.bf16 %v1163, %v1160
    %v1273 = vpack.c.bf16 %v1171, %v1168
    %v1274 = vpack.c.bf16 %v1179, %v1176
    %v1275 = vpack.c.bf16 %v1187, %v1184
    %v1276 = vpack.c.bf16 %v1195, %v1192
    %v1277 = vpack.c.bf16 %v1203, %v1200
    %v1278 = vpack.c.bf16 %v1211, %v1208
    %v1279 = vpack.c.bf16 %v1219, %v1216
    %v1280 = vpack.c.bf16 %v1227, %v1224
    %v1281 = vpack.c.bf16 %v1235, %v1232
    %v1282 = vpack.c.bf16 %v1243, %v1240
    %v1283 = vpack.c.bf16 %v1251, %v1248
    %v1284 = vpack.c.bf16 %v1259, %v1256
    %v1285 = vpack.c.bf16 %v1267, %v1264
    %v1286 = vld [vmem:[%s4] sm:$0xf]
    %v1287 = vld [vmem:[%s4 + $0x4] sm:$0xf]
    %v1288 = vld [vmem:[%s4 + $0x8] sm:$0xf]
    %v1289 = vld [vmem:[%s4 + $0xc] sm:$0xf]
    %v1290 = vld [vmem:[%s4 + $0x10] sm:$0xf]
    %v1291 = vld [vmem:[%s4 + $0x14] sm:$0xf]
    %v1292 = vld [vmem:[%s4 + $0x18] sm:$0xf]
    %v1293 = vld [vmem:[%s4 + $0x1c] sm:$0xf]
    %v1294 = vld [vmem:[%s4 + $0x20] sm:$0xf]
    %v1295 = vld [vmem:[%s4 + $0x24] sm:$0xf]
    %v1296 = vld [vmem:[%s4 + $0x28] sm:$0xf]
    %v1297 = vld [vmem:[%s4 + $0x2c] sm:$0xf]
    %v1298 = vld [vmem:[%s4 + $0x30] sm:$0xf]
    %v1299 = vld [vmem:[%s4 + $0x34] sm:$0xf]
    %v1300 = vld [vmem:[%s4 + $0x38] sm:$0xf]
    %v1301 = vld [vmem:[%s4 + $0x3c] sm:$0xf]
    %v1302 = vld [vmem:[%s4 + $0x40] sm:$0xf]
    %v1303 = vld [vmem:[%s4 + $0x44] sm:$0xf]
    %v1304 = vld [vmem:[%s4 + $0x48] sm:$0xf]
    %v1305 = vld [vmem:[%s4 + $0x4c] sm:$0xf]
    %v1306 = vld [vmem:[%s4 + $0x50] sm:$0xf]
    %v1307 = vld [vmem:[%s4 + $0x54] sm:$0xf]
    %v1308 = vld [vmem:[%s4 + $0x58] sm:$0xf]
    %v1309 = vld [vmem:[%s4 + $0x5c] sm:$0xf]
    %v1310 = vld [vmem:[%s4 + $0x60] sm:$0xf]
    %v1311 = vld [vmem:[%s4 + $0x64] sm:$0xf]
    %v1312 = vld [vmem:[%s4 + $0x68] sm:$0xf]
    %v1313 = vld [vmem:[%s4 + $0x6c] sm:$0xf]
    %v1314 = vld [vmem:[%s4 + $0x70] sm:$0xf]
    %v1315 = vld [vmem:[%s4 + $0x74] sm:$0xf]
    %v1316 = vld [vmem:[%s4 + $0x78] sm:$0xf]
    %v1317 = vld [vmem:[%s4 + $0x7c] sm:$0xf]
    %1319 = vset.pattern.permute.xlu0 0
    %1320 = vperm.xlu0 %1319, %v1286
    %v1321 = vpop.permute.xlu0 %1320
    %v1324 = vunpack.c.l.s4 839922192
    %v1325 = vunpack.c.0.s8 %v1324
    %v1326 = vlaneseq
    %v1327 = vshrl.u32 %v1326, 7
    %v1328 = vsub.s32 %v1325, %v1327
    %v1329 = vrot.slane %v1321, %v1328
    %1331 = vset.pattern.permute.xlu0 0
    %1332 = vperm.xlu0 %1331, %v1287
    %v1333 = vpop.permute.xlu0 %1332
    %v1336 = vunpack.c.l.s4 839922192
    %v1337 = vunpack.c.0.s8 %v1336
    %v1338 = vlaneseq
    %v1339 = vshrl.u32 %v1338, 7
    %v1340 = vsub.s32 %v1337, %v1339
    %v1341 = vrot.slane %v1333, %v1340
    %1343 = vset.pattern.permute.xlu0 0
    %1344 = vperm.xlu0 %1343, %v1288
    %v1345 = vpop.permute.xlu0 %1344
    %v1348 = vunpack.c.l.s4 839922192
    %v1349 = vunpack.c.0.s8 %v1348
    %v1350 = vlaneseq
    %v1351 = vshrl.u32 %v1350, 7
    %v1352 = vsub.s32 %v1349, %v1351
    %v1353 = vrot.slane %v1345, %v1352
    %1355 = vset.pattern.permute.xlu0 0
    %1356 = vperm.xlu0 %1355, %v1289
    %v1357 = vpop.permute.xlu0 %1356
    %v1360 = vunpack.c.l.s4 839922192
    %v1361 = vunpack.c.0.s8 %v1360
    %v1362 = vlaneseq
    %v1363 = vshrl.u32 %v1362, 7
    %v1364 = vsub.s32 %v1361, %v1363
    %v1365 = vrot.slane %v1357, %v1364
    %1367 = vset.pattern.permute.xlu0 0
    %1368 = vperm.xlu0 %1367, %v1290
    %v1369 = vpop.permute.xlu0 %1368
    %v1372 = vunpack.c.l.s4 839922192
    %v1373 = vunpack.c.0.s8 %v1372
    %v1374 = vlaneseq
    %v1375 = vshrl.u32 %v1374, 7
    %v1376 = vsub.s32 %v1373, %v1375
    %v1377 = vrot.slane %v1369, %v1376
    %1379 = vset.pattern.permute.xlu0 0
    %1380 = vperm.xlu0 %1379, %v1291
    %v1381 = vpop.permute.xlu0 %1380
    %v1384 = vunpack.c.l.s4 839922192
    %v1385 = vunpack.c.0.s8 %v1384
    %v1386 = vlaneseq
    %v1387 = vshrl.u32 %v1386, 7
    %v1388 = vsub.s32 %v1385, %v1387
    %v1389 = vrot.slane %v1381, %v1388
    %1391 = vset.pattern.permute.xlu0 0
    %1392 = vperm.xlu0 %1391, %v1292
    %v1393 = vpop.permute.xlu0 %1392
    %v1396 = vunpack.c.l.s4 839922192
    %v1397 = vunpack.c.0.s8 %v1396
    %v1398 = vlaneseq
    %v1399 = vshrl.u32 %v1398, 7
    %v1400 = vsub.s32 %v1397, %v1399
    %v1401 = vrot.slane %v1393, %v1400
    %1403 = vset.pattern.permute.xlu0 0
    %1404 = vperm.xlu0 %1403, %v1293
    %v1405 = vpop.permute.xlu0 %1404
    %v1408 = vunpack.c.l.s4 839922192
    %v1409 = vunpack.c.0.s8 %v1408
    %v1410 = vlaneseq
    %v1411 = vshrl.u32 %v1410, 7
    %v1412 = vsub.s32 %v1409, %v1411
    %v1413 = vrot.slane %v1405, %v1412
    %1415 = vset.pattern.permute.xlu0 0
    %1416 = vperm.xlu0 %1415, %v1294
    %v1417 = vpop.permute.xlu0 %1416
    %v1420 = vunpack.c.l.s4 839922192
    %v1421 = vunpack.c.0.s8 %v1420
    %v1422 = vlaneseq
    %v1423 = vshrl.u32 %v1422, 7
    %v1424 = vsub.s32 %v1421, %v1423
    %v1425 = vrot.slane %v1417, %v1424
    %1427 = vset.pattern.permute.xlu0 0
    %1428 = vperm.xlu0 %1427, %v1295
    %v1429 = vpop.permute.xlu0 %1428
    %v1432 = vunpack.c.l.s4 839922192
    %v1433 = vunpack.c.0.s8 %v1432
    %v1434 = vlaneseq
    %v1435 = vshrl.u32 %v1434, 7
    %v1436 = vsub.s32 %v1433, %v1435
    %v1437 = vrot.slane %v1429, %v1436
    %1439 = vset.pattern.permute.xlu0 0
    %1440 = vperm.xlu0 %1439, %v1296
    %v1441 = vpop.permute.xlu0 %1440
    %v1444 = vunpack.c.l.s4 839922192
    %v1445 = vunpack.c.0.s8 %v1444
    %v1446 = vlaneseq
    %v1447 = vshrl.u32 %v1446, 7
    %v1448 = vsub.s32 %v1445, %v1447
    %v1449 = vrot.slane %v1441, %v1448
    %1451 = vset.pattern.permute.xlu0 0
    %1452 = vperm.xlu0 %1451, %v1297
    %v1453 = vpop.permute.xlu0 %1452
    %v1456 = vunpack.c.l.s4 839922192
    %v1457 = vunpack.c.0.s8 %v1456
    %v1458 = vlaneseq
    %v1459 = vshrl.u32 %v1458, 7
    %v1460 = vsub.s32 %v1457, %v1459
    %v1461 = vrot.slane %v1453, %v1460
    %1463 = vset.pattern.permute.xlu0 0
    %1464 = vperm.xlu0 %1463, %v1298
    %v1465 = vpop.permute.xlu0 %1464
    %v1468 = vunpack.c.l.s4 839922192
    %v1469 = vunpack.c.0.s8 %v1468
    %v1470 = vlaneseq
    %v1471 = vshrl.u32 %v1470, 7
    %v1472 = vsub.s32 %v1469, %v1471
    %v1473 = vrot.slane %v1465, %v1472
    %1475 = vset.pattern.permute.xlu0 0
    %1476 = vperm.xlu0 %1475, %v1299
    %v1477 = vpop.permute.xlu0 %1476
    %v1480 = vunpack.c.l.s4 839922192
    %v1481 = vunpack.c.0.s8 %v1480
    %v1482 = vlaneseq
    %v1483 = vshrl.u32 %v1482, 7
    %v1484 = vsub.s32 %v1481, %v1483
    %v1485 = vrot.slane %v1477, %v1484
    %1487 = vset.pattern.permute.xlu0 0
    %1488 = vperm.xlu0 %1487, %v1300
    %v1489 = vpop.permute.xlu0 %1488
    %v1492 = vunpack.c.l.s4 839922192
    %v1493 = vunpack.c.0.s8 %v1492
    %v1494 = vlaneseq
    %v1495 = vshrl.u32 %v1494, 7
    %v1496 = vsub.s32 %v1493, %v1495
    %v1497 = vrot.slane %v1489, %v1496
    %1499 = vset.pattern.permute.xlu0 0
    %1500 = vperm.xlu0 %1499, %v1301
    %v1501 = vpop.permute.xlu0 %1500
    %v1504 = vunpack.c.l.s4 839922192
    %v1505 = vunpack.c.0.s8 %v1504
    %v1506 = vlaneseq
    %v1507 = vshrl.u32 %v1506, 7
    %v1508 = vsub.s32 %v1505, %v1507
    %v1509 = vrot.slane %v1501, %v1508
    %1511 = vset.pattern.permute.xlu0 0
    %1512 = vperm.xlu0 %1511, %v1302
    %v1513 = vpop.permute.xlu0 %1512
    %v1516 = vunpack.c.l.s4 839922192
    %v1517 = vunpack.c.0.s8 %v1516
    %v1518 = vlaneseq
    %v1519 = vshrl.u32 %v1518, 7
    %v1520 = vsub.s32 %v1517, %v1519
    %v1521 = vrot.slane %v1513, %v1520
    %1523 = vset.pattern.permute.xlu0 0
    %1524 = vperm.xlu0 %1523, %v1303
    %v1525 = vpop.permute.xlu0 %1524
    %v1528 = vunpack.c.l.s4 839922192
    %v1529 = vunpack.c.0.s8 %v1528
    %v1530 = vlaneseq
    %v1531 = vshrl.u32 %v1530, 7
    %v1532 = vsub.s32 %v1529, %v1531
    %v1533 = vrot.slane %v1525, %v1532
    %1535 = vset.pattern.permute.xlu0 0
    %1536 = vperm.xlu0 %1535, %v1304
    %v1537 = vpop.permute.xlu0 %1536
    %v1540 = vunpack.c.l.s4 839922192
    %v1541 = vunpack.c.0.s8 %v1540
    %v1542 = vlaneseq
    %v1543 = vshrl.u32 %v1542, 7
    %v1544 = vsub.s32 %v1541, %v1543
    %v1545 = vrot.slane %v1537, %v1544
    %1547 = vset.pattern.permute.xlu0 0
    %1548 = vperm.xlu0 %1547, %v1305
    %v1549 = vpop.permute.xlu0 %1548
    %v1552 = vunpack.c.l.s4 839922192
    %v1553 = vunpack.c.0.s8 %v1552
    %v1554 = vlaneseq
    %v1555 = vshrl.u32 %v1554, 7
    %v1556 = vsub.s32 %v1553, %v1555
    %v1557 = vrot.slane %v1549, %v1556
    %1559 = vset.pattern.permute.xlu0 0
    %1560 = vperm.xlu0 %1559, %v1306
    %v1561 = vpop.permute.xlu0 %1560
    %v1564 = vunpack.c.l.s4 839922192
    %v1565 = vunpack.c.0.s8 %v1564
    %v1566 = vlaneseq
    %v1567 = vshrl.u32 %v1566, 7
    %v1568 = vsub.s32 %v1565, %v1567
    %v1569 = vrot.slane %v1561, %v1568
    %1571 = vset.pattern.permute.xlu0 0
    %1572 = vperm.xlu0 %1571, %v1307
    %v1573 = vpop.permute.xlu0 %1572
    %v1576 = vunpack.c.l.s4 839922192
    %v1577 = vunpack.c.0.s8 %v1576
    %v1578 = vlaneseq
    %v1579 = vshrl.u32 %v1578, 7
    %v1580 = vsub.s32 %v1577, %v1579
    %v1581 = vrot.slane %v1573, %v1580
    %1583 = vset.pattern.permute.xlu0 0
    %1584 = vperm.xlu0 %1583, %v1308
    %v1585 = vpop.permute.xlu0 %1584
    %v1588 = vunpack.c.l.s4 839922192
    %v1589 = vunpack.c.0.s8 %v1588
    %v1590 = vlaneseq
    %v1591 = vshrl.u32 %v1590, 7
    %v1592 = vsub.s32 %v1589, %v1591
    %v1593 = vrot.slane %v1585, %v1592
    %1595 = vset.pattern.permute.xlu0 0
    %1596 = vperm.xlu0 %1595, %v1309
    %v1597 = vpop.permute.xlu0 %1596
    %v1600 = vunpack.c.l.s4 839922192
    %v1601 = vunpack.c.0.s8 %v1600
    %v1602 = vlaneseq
    %v1603 = vshrl.u32 %v1602, 7
    %v1604 = vsub.s32 %v1601, %v1603
    %v1605 = vrot.slane %v1597, %v1604
    %1607 = vset.pattern.permute.xlu0 0
    %1608 = vperm.xlu0 %1607, %v1310
    %v1609 = vpop.permute.xlu0 %1608
    %v1612 = vunpack.c.l.s4 839922192
    %v1613 = vunpack.c.0.s8 %v1612
    %v1614 = vlaneseq
    %v1615 = vshrl.u32 %v1614, 7
    %v1616 = vsub.s32 %v1613, %v1615
    %v1617 = vrot.slane %v1609, %v1616
    %1619 = vset.pattern.permute.xlu0 0
    %1620 = vperm.xlu0 %1619, %v1311
    %v1621 = vpop.permute.xlu0 %1620
    %v1624 = vunpack.c.l.s4 839922192
    %v1625 = vunpack.c.0.s8 %v1624
    %v1626 = vlaneseq
    %v1627 = vshrl.u32 %v1626, 7
    %v1628 = vsub.s32 %v1625, %v1627
    %v1629 = vrot.slane %v1621, %v1628
    %1631 = vset.pattern.permute.xlu0 0
    %1632 = vperm.xlu0 %1631, %v1312
    %v1633 = vpop.permute.xlu0 %1632
    %v1636 = vunpack.c.l.s4 839922192
    %v1637 = vunpack.c.0.s8 %v1636
    %v1638 = vlaneseq
    %v1639 = vshrl.u32 %v1638, 7
    %v1640 = vsub.s32 %v1637, %v1639
    %v1641 = vrot.slane %v1633, %v1640
    %1643 = vset.pattern.permute.xlu0 0
    %1644 = vperm.xlu0 %1643, %v1313
    %v1645 = vpop.permute.xlu0 %1644
    %v1648 = vunpack.c.l.s4 839922192
    %v1649 = vunpack.c.0.s8 %v1648
    %v1650 = vlaneseq
    %v1651 = vshrl.u32 %v1650, 7
    %v1652 = vsub.s32 %v1649, %v1651
    %v1653 = vrot.slane %v1645, %v1652
    %1655 = vset.pattern.permute.xlu0 0
    %1656 = vperm.xlu0 %1655, %v1314
    %v1657 = vpop.permute.xlu0 %1656
    %v1660 = vunpack.c.l.s4 839922192
    %v1661 = vunpack.c.0.s8 %v1660
    %v1662 = vlaneseq
    %v1663 = vshrl.u32 %v1662, 7
    %v1664 = vsub.s32 %v1661, %v1663
    %v1665 = vrot.slane %v1657, %v1664
    %1667 = vset.pattern.permute.xlu0 0
    %1668 = vperm.xlu0 %1667, %v1315
    %v1669 = vpop.permute.xlu0 %1668
    %v1672 = vunpack.c.l.s4 839922192
    %v1673 = vunpack.c.0.s8 %v1672
    %v1674 = vlaneseq
    %v1675 = vshrl.u32 %v1674, 7
    %v1676 = vsub.s32 %v1673, %v1675
    %v1677 = vrot.slane %v1669, %v1676
    %1679 = vset.pattern.permute.xlu0 0
    %1680 = vperm.xlu0 %1679, %v1316
    %v1681 = vpop.permute.xlu0 %1680
    %v1684 = vunpack.c.l.s4 839922192
    %v1685 = vunpack.c.0.s8 %v1684
    %v1686 = vlaneseq
    %v1687 = vshrl.u32 %v1686, 7
    %v1688 = vsub.s32 %v1685, %v1687
    %v1689 = vrot.slane %v1681, %v1688
    %1691 = vset.pattern.permute.xlu0 0
    %1692 = vperm.xlu0 %1691, %v1317
    %v1693 = vpop.permute.xlu0 %1692
    %v1696 = vunpack.c.l.s4 839922192
    %v1697 = vunpack.c.0.s8 %v1696
    %v1698 = vlaneseq
    %v1699 = vshrl.u32 %v1698, 7
    %v1700 = vsub.s32 %v1697, %v1699
    %v1701 = vrot.slane %v1693, %v1700
    %v1734 = vunpack.c.l.b16 %v1329
    %v1735 = vunpack.c.l.b16 %v1341
    %v1736 = vunpack.c.l.b16 %v1353
    %v1737 = vunpack.c.l.b16 %v1365
    %v1738 = vunpack.c.l.b16 %v1377
    %v1739 = vunpack.c.l.b16 %v1389
    %v1740 = vunpack.c.l.b16 %v1401
    %v1741 = vunpack.c.l.b16 %v1413
    %v1742 = vunpack.c.l.b16 %v1425
    %v1743 = vunpack.c.l.b16 %v1437
    %v1744 = vunpack.c.l.b16 %v1449
    %v1745 = vunpack.c.l.b16 %v1461
    %v1746 = vunpack.c.l.b16 %v1473
    %v1747 = vunpack.c.l.b16 %v1485
    %v1748 = vunpack.c.l.b16 %v1497
    %v1749 = vunpack.c.l.b16 %v1509
    %v1750 = vunpack.c.l.b16 %v1521
    %v1751 = vunpack.c.l.b16 %v1533
    %v1752 = vunpack.c.l.b16 %v1545
    %v1753 = vunpack.c.l.b16 %v1557
    %v1754 = vunpack.c.l.b16 %v1569
    %v1755 = vunpack.c.l.b16 %v1581
    %v1756 = vunpack.c.l.b16 %v1593
    %v1757 = vunpack.c.l.b16 %v1605
    %v1758 = vunpack.c.l.b16 %v1617
    %v1759 = vunpack.c.l.b16 %v1629
    %v1760 = vunpack.c.l.b16 %v1641
    %v1761 = vunpack.c.l.b16 %v1653
    %v1762 = vunpack.c.l.b16 %v1665
    %v1763 = vunpack.c.l.b16 %v1677
    %v1764 = vunpack.c.l.b16 %v1689
    %v1765 = vunpack.c.l.b16 %v1701
    %v1766 = vpack.c.b16 %v1735, %v1734
    %v1767 = vpack.c.b16 %v1737, %v1736
    %v1768 = vpack.c.b16 %v1739, %v1738
    %v1769 = vpack.c.b16 %v1741, %v1740
    %v1770 = vpack.c.b16 %v1743, %v1742
    %v1771 = vpack.c.b16 %v1745, %v1744
    %v1772 = vpack.c.b16 %v1747, %v1746
    %v1773 = vpack.c.b16 %v1749, %v1748
    %v1774 = vpack.c.b16 %v1751, %v1750
    %v1775 = vpack.c.b16 %v1753, %v1752
    %v1776 = vpack.c.b16 %v1755, %v1754
    %v1777 = vpack.c.b16 %v1757, %v1756
    %v1778 = vpack.c.b16 %v1759, %v1758
    %v1779 = vpack.c.b16 %v1761, %v1760
    %v1780 = vpack.c.b16 %v1763, %v1762
    %v1781 = vpack.c.b16 %v1765, %v1764
    %v1798 = vadd.bf16 %v1270, %v1766
    %v1799 = vadd.bf16 %v1271, %v1767
    %v1800 = vadd.bf16 %v1272, %v1768
    %v1801 = vadd.bf16 %v1273, %v1769
    %v1802 = vadd.bf16 %v1274, %v1770
    %v1803 = vadd.bf16 %v1275, %v1771
    %v1804 = vadd.bf16 %v1276, %v1772
    %v1805 = vadd.bf16 %v1277, %v1773
    %v1806 = vadd.bf16 %v1278, %v1774
    %v1807 = vadd.bf16 %v1279, %v1775
    %v1808 = vadd.bf16 %v1280, %v1776
    %v1809 = vadd.bf16 %v1281, %v1777
    %v1810 = vadd.bf16 %v1282, %v1778
    %v1811 = vadd.bf16 %v1283, %v1779
    %v1812 = vadd.bf16 %v1284, %v1780
    %v1813 = vadd.bf16 %v1285, %v1781
    %v1814 = vmax.bf16 %v1798, 0
    %v1815 = vmax.bf16 %v1799, 0
    %v1816 = vmax.bf16 %v1800, 0
    %v1817 = vmax.bf16 %v1801, 0
    %v1818 = vmax.bf16 %v1802, 0
    %v1819 = vmax.bf16 %v1803, 0
    %v1820 = vmax.bf16 %v1804, 0
    %v1821 = vmax.bf16 %v1805, 0
    %v1822 = vmax.bf16 %v1806, 0
    %v1823 = vmax.bf16 %v1807, 0
    %v1824 = vmax.bf16 %v1808, 0
    %v1825 = vmax.bf16 %v1809, 0
    %v1826 = vmax.bf16 %v1810, 0
    %v1827 = vmax.bf16 %v1811, 0
    %v1828 = vmax.bf16 %v1812, 0
    %v1829 = vmax.bf16 %v1813, 0
    %v1830 = vld [vmem:[%s5] sm:$0xff]
    %v1832 = vunpack.c.l.b16 %v1830
    %v1833 = vunpack.c.h.b16 %v1830
    %v1834 = vpack.c.b16 %v1832, %v1832
    %v1835 = vpack.c.b16 %v1833, %v1833
    %1838 = vmatprep.subr.bf16.mxu0 0
    %1839 = vmatpush1.bf16.msra.mxu0 %v1821
    %1840 = vmatprep.subr.bf16.mxu0 0
    %1841 = vmatpush1.bf16.msra.mxu0 %v1820
    %1842 = vmatprep.subr.bf16.mxu0 0
    %1843 = vmatpush1.bf16.msra.mxu0 %v1819
    %1844 = vmatprep.subr.bf16.mxu0 0
    %1845 = vmatpush1.bf16.msra.mxu0 %v1818
    %1846 = vmatprep.subr.bf16.mxu0 0
    %1847 = vmatpush1.bf16.msra.mxu0 %v1817
    %1848 = vmatprep.subr.bf16.mxu0 0
    %1849 = vmatpush1.bf16.msra.mxu0 %v1816
    %1850 = vmatprep.subr.bf16.mxu0 0
    %1851 = vmatpush1.bf16.msra.mxu0 %v1815
    %1852 = vmatprep.subr.bf16.mxu0 0
    %1853 = vmatpush1.bf16.msra.mxu0 %v1814
    %1854 = vmatprep.subr.bf16.mxu0 0
    %1855 = vmatpush2.bf16.msra.mxu0 %v1829
    %1856 = vmatprep.subr.bf16.mxu0 0
    %1857 = vmatpush2.bf16.msra.mxu0 %v1828
    %1858 = vmatprep.subr.bf16.mxu0 0
    %1859 = vmatpush2.bf16.msra.mxu0 %v1827
    %1860 = vmatprep.subr.bf16.mxu0 0
    %1861 = vmatpush2.bf16.msra.mxu0 %v1826
    %1862 = vmatprep.subr.bf16.mxu0 0
    %1863 = vmatpush2.bf16.msra.mxu0 %v1825
    %1864 = vmatprep.subr.bf16.mxu0 0
    %1865 = vmatpush2.bf16.msra.mxu0 %v1824
    %1866 = vmatprep.subr.bf16.mxu0 0
    %1867 = vmatpush2.bf16.msra.mxu0 %v1823
    %1868 = vmatprep.subr.bf16.mxu0 0
    %1869 = vmatpush2.bf16.msra.mxu0 %v1822
    %1870 = vmatprep.mubr.bf16.mxu0 %v1835
    %1871 = vmatmul.mubr.bf16.gmra.mxu0 %v1834
    %v1872 = vpop.f32.mrf.mxu0
    %v1873 = vadd.f32 0.0, %v1872
    %v1874 = vpop.f32.mrf.mxu0
    %v1875 = vpop.f32.mrf.mxu0
    %v1876 = vpop.f32.mrf.mxu0
    %1877 = vdwg.mxu0
    %s1878 = sld [smem:[#allocation2]]
    %v1879 = vstv %s1878
    %v1880 = vadd.f32 %v1873, %v1879
    %vm1881 = vcmask 57344
    %1882 = vst.msk [vmem:[#allocation3] sm:$0x1] %vm1881, %v1880
    // Predicated region
    $region30: #{tpu_custom_call.1} parent=1 // pred_check
      _
    $region31: #{tpu_custom_call.1} parent=1 // pred_check_branch
      %1884 = sbr.rel (0) target = $region33
    $region32: #{tpu_custom_call.1} parent=1 // pred_region
      %s1886 = ssub.s32 16, 16
      %1887 = vsyncadd [#allocation4], %s1886
      %s1889 = sshll.u32 [#allocation3], 4
      %s1890 = int_to_ptr.vmem [resolvable:$true] %s1889
      %1892 = dma.vmem_to_hbm [thread:$0]  %s1890, 16, %s7, [#allocation4]
    $region33: #{tpu_custom_call.1} parent=1 // pred_fallthru
      _
    // Predicated region
    $region34: #{tpu_custom_call.1} parent=1 // pred_check
      _
    $region35: #{tpu_custom_call.1} parent=1 // pred_check_branch
      %1894 = sbr.rel (0) target = $region37
    $region36: #{tpu_custom_call.1} parent=1 // pred_region
      %1895 = dma.done [#allocation4], 16
    $region37: #{tpu_custom_call.1} parent=1 // pred_fallthru
      _
    %1896 = vsyncpa [#allocation4], 1

</llo_original>
